<compile_context>
chip_gen: v6e
topology: v6e:2x2x1
jax: 0.10.0
libtpu: 0.0.40
codegen_flags: <defaults>
</compile_context>

<pallas_src>
import functools
import math

import jax
import jax.numpy as jnp
from jax import lax
from jax.experimental import pallas as pl
from jax.experimental.pallas import tpu as pltpu


def _xattn_kernel(hs_ref, ctx_ref,
                  wq_ref, bq_ref, wkv_ref, bkv_ref,
                  mask_ref,
                  ctx_out_ref, *scores_refs,
                  num_heads_per_group, head_dim, mxu_dtype):
    """One (head-group g, batch b, query-tile q) step: grouped Q / fused-KV
    projections, per-head softmax-attention, outputs stored in final layouts."""
    HG = num_heads_per_group
    Dh = head_dim
    GD = HG * Dh
    scale = 1.0 / math.sqrt(Dh)

    hs = hs_ref[0].astype(mxu_dtype)     # [Tq, H]
    cx = ctx_ref[0].astype(mxu_dtype)    # [Sk, C]

    # Grouped projections (wide-N MXU matmuls, bf16 operands, f32 accumulation).
    q = jnp.dot(hs, wq_ref[0], preferred_element_type=jnp.float32) + bq_ref[0]    # [Tq, GD]
    kv = jnp.dot(cx, wkv_ref[0], preferred_element_type=jnp.float32) + bkv_ref[0]  # [Sk, 2*GD]

    # Fold the softmax scale into q ([Tq, GD] mul once per step, not [Tq, Sk] per head).
    q = (q * scale).astype(mxu_dtype)
    k = kv[:, :GD].astype(mxu_dtype)
    v = kv[:, GD:].astype(mxu_dtype)

    Tq = q.shape[0]
    Sk = k.shape[0]
    # Hoist the mask broadcast out of the head loop (broadcast_in_dim is not CSE'd).
    mask_b = jnp.broadcast_to(mask_ref[0, 0], (Tq, Sk))                            # [Tq, Sk]

    outs = []
    for h in range(HG):                  # HG is a small compile-time constant
        lo, hi = h * Dh, (h + 1) * Dh
        qh = q[:, lo:hi]                 # [Tq, Dh]
        kh = k[:, lo:hi]                 # [Sk, Dh]
        vh = v[:, lo:hi]                 # [Sk, Dh]

        # QK^T without explicit transpose: contract the last axes on the MXU.
        s = lax.dot_general(qh, kh, dimension_numbers=(((1,), (1,)), ((), ())),
                            preferred_element_type=jnp.float32)                   # [Tq, Sk]
        s = s + mask_b

        m = jnp.max(s, axis=-1, keepdims=True)
        e = jnp.exp(s - m)
        denom = jnp.sum(e, axis=-1, keepdims=True)
        p = e * pl.reciprocal(denom, approx=True)

        o = jnp.dot(p.astype(mxu_dtype), vh, preferred_element_type=jnp.float32)  # [Tq, Dh]
        outs.append(o)

        if scores_refs:                  # lane-dense [Tq, Sk] store per head
            scores_refs[0][0, h] = s.astype(scores_refs[0].dtype)

    # Single full-width (GD >= 128-lane when grouped) unmasked store per step.
    ctx_out_ref[0] = jnp.concatenate(outs, axis=-1).astype(ctx_out_ref.dtype)


def _choose_q_tile(Sq, max_tile):
    if Sq <= max_tile:
        return Sq
    start = max_tile - (max_tile % 8)
    for t in range(start, 7, -8):        # multiple-of-8 divisor of Sq, <= max_tile
        if Sq % t == 0:
            return t
    return Sq                            # no clean divisor: fall back to full Sq


def bert_out_attention(hidden_states, context, attention_mask,
                       wq, bq, wk, bk, wv, bv, num_heads,
                       *, mxu_dtype=jnp.bfloat16, return_scores=True,
                       scores_dtype=jnp.float32, max_q_tile=512):
    """hidden_states [B,Sq,H], context [B,Sk,C], attention_mask [B,1,1,Sk].
    wq [H, nH*Dh], bq [nH*Dh], wk/wv [C, nH*Dh], bk/bv [nH*Dh]."""
    B, Sq, H = hidden_states.shape
    _, Sk, C = context.shape
    all_head = wq.shape[1]
    Dh = all_head // num_heads

    # --- head-group size: want GD = HG*Dh >= 256 lanes AND GD % 128 == 0 whenever
    # --- G > 1 (out-spec (8,128) divisibility); otherwise take all heads (G == 1).
    target_lanes = 256
    HG = num_heads
    for d in range(1, num_heads):
        if num_heads % d == 0 and d * Dh >= target_lanes and (d * Dh) % 128 == 0:
            HG = d
            break
    G = num_heads // HG
    GD = HG * Dh

    wsz = jnp.dtype(mxu_dtype).itemsize
    ssz = jnp.dtype(scores_dtype).itemsize if return_scores else 0

    # --- query tile, shrunk against a VMEM budget (keeps v7x's 64 MiB happy).
    def vmem_est(tq):
        inputs = 2 * (tq * H * 4 + Sk * C * 4 + H * GD * wsz + GD * 4
                      + C * 2 * GD * wsz + 2 * GD * 4 + Sk * 4)
        outputs = 2 * (tq * GD * 4 + HG * tq * Sk * ssz)
        inter = (tq * GD * 4 + Sk * 2 * GD * 4 + 2 * tq * GD * wsz
                 + 4 * tq * Sk * 4 + 2 * tq * GD * 4)
        return inputs + outputs + inter

    budget = 40 * 1024 * 1024
    Tq = _choose_q_tile(Sq, max_q_tile)
    while (vmem_est(Tq) > budget and Tq >= 16 and Tq % 16 == 0
           and Sq % (Tq // 2) == 0):
        Tq //= 2
    NQ = Sq // Tq

    # --- host-side glue: per-group weights [G, in, GD] (bf16), fused K||V [G, C, 2GD].
    wq_g = wq.reshape(H, G, GD).transpose(1, 0, 2).astype(mxu_dtype)
    bq_g = bq.reshape(G, 1, GD).astype(jnp.float32)
    wk_g = wk.reshape(C, G, GD).transpose(1, 0, 2)
    wv_g = wv.reshape(C, G, GD).transpose(1, 0, 2)
    wkv_g = jnp.concatenate([wk_g, wv_g], axis=-1).astype(mxu_dtype)     # [G, C, 2*GD]
    bkv_g = jnp.concatenate([bk.reshape(G, 1, GD), bv.reshape(G, 1, GD)],
                            axis=-1).astype(jnp.float32)                 # [G, 1, 2*GD]

    # --- grid order: keep whichever is cheaper resident (weights vs activations).
    w_total = G * (H * GD * wsz + C * 2 * GD * wsz + 3 * GD * 4)
    act_total = B * (Sq * H * 4 + Sk * C * 4)
    extra_act_outer = (B * NQ - 1) * w_total       # weights refetched each step
    extra_w_outer = (G - 1) * act_total            # activations refetched per group
    weights_outer = extra_w_outer <= extra_act_outer

    if weights_outer:
        grid = (G, B, NQ)
        def ix(fn):
            return lambda g, b, q: fn(b, q, g)
    else:
        grid = (B, NQ, G)
        def ix(fn):
            return lambda b, q, g: fn(b, q, g)

    in_specs = [
        pl.BlockSpec((1, Tq, H), ix(lambda b, q, g: (b, q, 0))),         # hidden_states
        pl.BlockSpec((1, Sk, C), ix(lambda b, q, g: (b, 0, 0))),         # context
        pl.BlockSpec((1, H, GD), ix(lambda b, q, g: (g, 0, 0))),         # wq per group
        pl.BlockSpec((1, 1, GD), ix(lambda b, q, g: (g, 0, 0))),         # bq per group
        pl.BlockSpec((1, C, 2 * GD), ix(lambda b, q, g: (g, 0, 0))),     # wk||wv per group
        pl.BlockSpec((1, 1, 2 * GD), ix(lambda b, q, g: (g, 0, 0))),     # bk||bv per group
        pl.BlockSpec((1, 1, 1, Sk), ix(lambda b, q, g: (b, 0, 0, 0))),   # additive mask
    ]
    ctx_spec = pl.BlockSpec((1, Tq, GD), ix(lambda b, q, g: (b, q, g)))  # final layout
    if return_scores:
        out_shape = (jax.ShapeDtypeStruct((B, Sq, all_head), hidden_states.dtype),
                     jax.ShapeDtypeStruct((B, num_heads, Sq, Sk), scores_dtype))
        out_specs = (ctx_spec,
                     pl.BlockSpec((1, HG, Tq, Sk), ix(lambda b, q, g: (b, g, q, 0))))
    else:
        out_shape = jax.ShapeDtypeStruct((B, Sq, all_head), hidden_states.dtype)
        out_specs = ctx_spec

    kernel = functools.partial(_xattn_kernel, num_heads_per_group=HG,
                               head_dim=Dh, mxu_dtype=mxu_dtype)

    flops = 2 * B * (Sq * H * all_head            # Q projection
                     + Sk * C * 2 * all_head      # fused K||V projection
                     + num_heads * Sq * Sk * Dh   # QK^T
                     + num_heads * Sq * Sk * Dh)  # PV
    transcendentals = B * num_heads * Sq * (Sk + 1)
    bytes_accessed = (4 * (B * Sq * H + B * Sk * C + B * Sk + 3 * all_head
                           + B * Sq * all_head)
                      + wsz * (H * all_head + C * 2 * all_head)
                      + ssz * B * num_heads * Sq * Sk)

    vmem_limit = int(min(64 * 1024 * 1024, max(2 * vmem_est(Tq), 32 * 1024 * 1024)))

    result = pl.pallas_call(
        kernel,
        out_shape=out_shape,
        grid_spec=pltpu.PrefetchScalarGridSpec(
            num_scalar_prefetch=0,
            grid=grid,
            in_specs=in_specs,
            out_specs=out_specs,
        ),
        compiler_params=pltpu.CompilerParams(
            dimension_semantics=("parallel", "parallel", "parallel"),
            vmem_limit_bytes=vmem_limit),
        cost_estimate=pl.CostEstimate(
            flops=flops,
            transcendentals=transcendentals,
            bytes_accessed=bytes_accessed),
    )(hidden_states, context, wq_g, bq_g, wkv_g, bkv_g, attention_mask)

    return result if return_scores else result


def _reference(hidden_states, context, attention_mask, wq, bq, wk, bk, wv, bv, num_heads):
    B, Sq, H = hidden_states.shape
    _, Sk, C = context.shape
    all_head = wq.shape[1]
    Dh = all_head // num_heads

    def t4s(x):
        return x.reshape(x.shape[0], x.shape[1], num_heads, Dh).transpose(0, 2, 1, 3)

    q = t4s(hidden_states @ wq + bq)
    k = t4s(context @ wk + bk)
    v = t4s(context @ wv + bv)
    scores = jnp.einsum("bhqd,bhkd->bhqk", q, k) / math.sqrt(Dh)
    scores = scores + attention_mask
    probs = jax.nn.softmax(scores, axis=-1)
    ctx = jnp.einsum("bhqk,bhkd->bhqd", probs, v)
    ctx = ctx.transpose(0, 2, 1, 3).reshape(B, Sq, all_head)
    return ctx, scores


if __name__ == "__main__":
    # config: hidden_size=32, num_attention_heads=4, ctx_dim=32
    B, Sq, Sk = 2, 8, 8
    hidden_size, ctx_dim, num_heads = 32, 32, 4
    all_head = hidden_size

    key = jax.random.PRNGKey(0)
    ks = jax.random.split(key, 10)

    hidden_states = jax.random.normal(ks[0], (B, Sq, hidden_size), dtype=jnp.float32)
    context = jax.random.normal(ks[1], (B, Sk, ctx_dim), dtype=jnp.float32)
    # Standard BERT-style extended additive mask: 0 for visible, -10000 for masked.
    mask_bits = (jax.random.uniform(ks[2], (B, 1, 1, Sk)) > 0.2).astype(jnp.float32)
    attention_mask = (1.0 - mask_bits) * -10000.0

    wq = 0.05 * jax.random.normal(ks[3], (hidden_size, all_head), dtype=jnp.float32)
    bq = 0.01 * jax.random.normal(ks[4], (all_head,), dtype=jnp.float32)
    wk = 0.05 * jax.random.normal(ks[5], (ctx_dim, all_head), dtype=jnp.float32)
    bk = 0.01 * jax.random.normal(ks[6], (all_head,), dtype=jnp.float32)
    wv = 0.05 * jax.random.normal(ks[7], (ctx_dim, all_head), dtype=jnp.float32)
    bv = 0.01 * jax.random.normal(ks[8], (all_head,), dtype=jnp.float32)

    ctx_ref, scores_ref = _reference(
        hidden_states, context, attention_mask, wq, bq, wk, bk, wv, bv, num_heads)

    # 1) Default fast path: bf16 MXU operands, f32 accumulation.
    ctx_out, scores_out = bert_out_attention(
        hidden_states, context, attention_mask, wq, bq, wk, bk, wv, bv, num_heads)
    jax.block_until_ready((ctx_out, scores_out))
    assert jnp.allclose(scores_out, scores_ref, atol=1e-2, rtol=1e-2)
    assert jnp.allclose(ctx_out, ctx_ref, atol=2e-2, rtol=2e-2)

    # 2) Exact-f32 MXU path (tight tolerances vs the PyTorch-equivalent reference).
    ctx32, scores32 = bert_out_attention(
        hidden_states, context, attention_mask, wq, bq, wk, bk, wv, bv, num_heads,
        mxu_dtype=jnp.float32)
    jax.block_until_ready((ctx32, scores32))
    assert jnp.allclose(scores32, scores_ref, atol=1e-4, rtol=1e-4)
    assert jnp.allclose(ctx32, ctx_ref, atol=2e-3, rtol=2e-3)

    # 3) Context-only path (scores HBM writeback elided).
    ctx_only = bert_out_attention(
        hidden_states, context, attention_mask, wq, bq, wk, bk, wv, bv, num_heads,
        return_scores=False)
    jax.block_until_ready(ctx_only)
    assert jnp.allclose(ctx_only, ctx_ref, atol=2e-2, rtol=2e-2)

    print("KERNEL_OK")
</pallas_src>

<mosaic_0001>
module attributes {stable_mosaic.version = 11 : i64} {
  func.func @_xattn_kernel(%arg0: i32, %arg1: i32, %arg2: i32, %arg3: memref<1x8x32xf32, #tpu.memory_space<vmem>>, %arg4: memref<1x8x32xf32, #tpu.memory_space<vmem>>, %arg5: memref<1x32x32xbf16, #tpu.memory_space<vmem>>, %arg6: memref<1x1x32xf32, #tpu.memory_space<vmem>>, %arg7: memref<1x32x64xbf16, #tpu.memory_space<vmem>>, %arg8: memref<1x1x64xf32, #tpu.memory_space<vmem>>, %arg9: memref<1x1x1x8xf32, #tpu.memory_space<vmem>>, %arg10: memref<1x8x32xf32, #tpu.memory_space<vmem>>, %arg11: memref<1x4x8x8xf32, #tpu.memory_space<vmem>>) attributes {dimension_semantics = [#tpu.dimension_semantics<parallel>, #tpu.dimension_semantics<parallel>, #tpu.dimension_semantics<parallel>], iteration_bounds = array<i64: 1, 2, 1>, scalar_prefetch = 0 : i64, scratch_operands = 0 : i64, tpu.core_type = #tpu.core_type<tc>, window_params = [{transform_indices = @transform_0, window_bounds = array<i64: 1, 8, 32>}, {transform_indices = @transform_1, window_bounds = array<i64: 1, 8, 32>}, {transform_indices = @transform_2, window_bounds = array<i64: 1, 32, 32>}, {transform_indices = @transform_3, window_bounds = array<i64: 1, 1, 32>}, {transform_indices = @transform_4, window_bounds = array<i64: 1, 32, 64>}, {transform_indices = @transform_5, window_bounds = array<i64: 1, 1, 64>}, {transform_indices = @transform_6, window_bounds = array<i64: 1, 1, 1, 8>}, {transform_indices = @transform_7, window_bounds = array<i64: 1, 8, 32>}, {transform_indices = @transform_8, window_bounds = array<i64: 1, 4, 8, 8>}]} {
    %c0 = arith.constant 0 : index
    %c0_0 = arith.constant 0 : index
    %c0_1 = arith.constant 0 : index
    %0 = vector.load %arg3[%c0, %c0_0, %c0_1] : memref<1x8x32xf32, #tpu.memory_space<vmem>>, vector<1x8x32xf32>
    %1 = vector.shape_cast %0 : vector<1x8x32xf32> to vector<8x32xf32>
    %2 = arith.truncf %1 : vector<8x32xf32> to vector<8x32xbf16>
    %c0_2 = arith.constant 0 : index
    %c0_3 = arith.constant 0 : index
    %c0_4 = arith.constant 0 : index
    %3 = vector.load %arg4[%c0_2, %c0_3, %c0_4] : memref<1x8x32xf32, #tpu.memory_space<vmem>>, vector<1x8x32xf32>
    %4 = vector.shape_cast %3 : vector<1x8x32xf32> to vector<8x32xf32>
    %5 = arith.truncf %4 : vector<8x32xf32> to vector<8x32xbf16>
    %c0_5 = arith.constant 0 : index
    %c0_6 = arith.constant 0 : index
    %c0_7 = arith.constant 0 : index
    %6 = vector.load %arg5[%c0_5, %c0_6, %c0_7] : memref<1x32x32xbf16, #tpu.memory_space<vmem>>, vector<1x32x32xbf16>
    %7 = vector.shape_cast %6 : vector<1x32x32xbf16> to vector<32x32xbf16>
    %cst = arith.constant dense<0.000000e+00> : vector<8x32xf32>
    %8 = tpu.matmul %2, %7, %cst {dimension_numbers = #tpu.dot_dimension_numbers<[1], [0], [0], [1], [0, 0, 1, 1], [], []>} : vector<8x32xbf16>, vector<32x32xbf16>, vector<8x32xf32> -> vector<8x32xf32>
    %c0_8 = arith.constant 0 : index
    %c0_9 = arith.constant 0 : index
    %c0_10 = arith.constant 0 : index
    %9 = vector.load %arg6[%c0_8, %c0_9, %c0_10] : memref<1x1x32xf32, #tpu.memory_space<vmem>>, vector<1x1x32xf32>
    %10 = vector.shape_cast %9 : vector<1x1x32xf32> to vector<1x32xf32>
    %11 = vector.broadcast %10 : vector<1x32xf32> to vector<8x32xf32>
    %12 = arith.addf %8, %11 : vector<8x32xf32>
    %c0_11 = arith.constant 0 : index
    %c0_12 = arith.constant 0 : index
    %c0_13 = arith.constant 0 : index
    %13 = vector.load %arg7[%c0_11, %c0_12, %c0_13] : memref<1x32x64xbf16, #tpu.memory_space<vmem>>, vector<1x32x64xbf16>
    %14 = vector.shape_cast %13 : vector<1x32x64xbf16> to vector<32x64xbf16>
    %cst_14 = arith.constant dense<0.000000e+00> : vector<8x64xf32>
    %15 = tpu.matmul %5, %14, %cst_14 {dimension_numbers = #tpu.dot_dimension_numbers<[1], [0], [0], [1], [0, 0, 1, 1], [], []>} : vector<8x32xbf16>, vector<32x64xbf16>, vector<8x64xf32> -> vector<8x64xf32>
    %c0_15 = arith.constant 0 : index
    %c0_16 = arith.constant 0 : index
    %c0_17 = arith.constant 0 : index
    %16 = vector.load %arg8[%c0_15, %c0_16, %c0_17] : memref<1x1x64xf32, #tpu.memory_space<vmem>>, vector<1x1x64xf32>
    %17 = vector.shape_cast %16 : vector<1x1x64xf32> to vector<1x64xf32>
    %18 = vector.broadcast %17 : vector<1x64xf32> to vector<8x64xf32>
    %19 = arith.addf %15, %18 : vector<8x64xf32>
    %cst_18 = arith.constant 0.353553385 : f32
    %20 = vector.broadcast %cst_18 : f32 to vector<8x32xf32>
    %21 = arith.mulf %12, %20 : vector<8x32xf32>
    %22 = arith.truncf %21 : vector<8x32xf32> to vector<8x32xbf16>
    %23 = vector.extract_strided_slice %19 {offsets = [0, 0], sizes = [8, 32], strides = [1, 1]} : vector<8x64xf32> to vector<8x32xf32>
    %24 = arith.truncf %23 : vector<8x32xf32> to vector<8x32xbf16>
    %25 = vector.extract_strided_slice %19 {offsets = [0, 32], sizes = [8, 32], strides = [1, 1]} : vector<8x64xf32> to vector<8x32xf32>
    %26 = arith.truncf %25 : vector<8x32xf32> to vector<8x32xbf16>
    %c0_19 = arith.constant 0 : index
    %c0_20 = arith.constant 0 : index
    %c0_21 = arith.constant 0 : index
    %c0_22 = arith.constant 0 : index
    %27 = vector.load %arg9[%c0_19, %c0_20, %c0_21, %c0_22] : memref<1x1x1x8xf32, #tpu.memory_space<vmem>>, vector<1x1x1x8xf32>
    %28 = vector.shape_cast %27 : vector<1x1x1x8xf32> to vector<1x8xf32>
    %29 = vector.shape_cast %28 : vector<1x8xf32> to vector<1x8xf32>
    %30 = vector.broadcast %29 : vector<1x8xf32> to vector<8x8xf32>
    %31 = vector.extract_strided_slice %22 {offsets = [0, 0], sizes = [8, 8], strides = [1, 1]} : vector<8x32xbf16> to vector<8x8xbf16>
    %32 = vector.extract_strided_slice %24 {offsets = [0, 0], sizes = [8, 8], strides = [1, 1]} : vector<8x32xbf16> to vector<8x8xbf16>
    %33 = vector.extract_strided_slice %26 {offsets = [0, 0], sizes = [8, 8], strides = [1, 1]} : vector<8x32xbf16> to vector<8x8xbf16>
    %cst_23 = arith.constant dense<0.000000e+00> : vector<8x8xf32>
    %34 = tpu.matmul %31, %32, %cst_23 {dimension_numbers = #tpu.dot_dimension_numbers<[1], [1], [0], [0], [0, 0, 1, 0], [], []>} : vector<8x8xbf16>, vector<8x8xbf16>, vector<8x8xf32> -> vector<8x8xf32>
    %35 = arith.addf %34, %30 : vector<8x8xf32>
    %cst_24 = arith.constant dense<0xFF800000> : vector<8xf32>
    %36 = vector.multi_reduction <maximumf>, %35, %cst_24 [1] : vector<8x8xf32> to vector<8xf32>
    %37 = vector.shape_cast %36 : vector<8xf32> to vector<8x1xf32>
    %38 = vector.broadcast %37 : vector<8x1xf32> to vector<8x8xf32>
    %39 = arith.subf %35, %38 : vector<8x8xf32>
    %40 = math.exp %39 : vector<8x8xf32>
    %cst_25 = arith.constant dense<0.000000e+00> : vector<8xf32>
    %41 = vector.multi_reduction <add>, %40, %cst_25 [1] : vector<8x8xf32> to vector<8xf32>
    %42 = vector.shape_cast %41 : vector<8xf32> to vector<8x1xf32>
    %43 = tpu.reciprocal %42 {approx = true} : vector<8x1xf32> -> vector<8x1xf32>
    %44 = vector.broadcast %43 : vector<8x1xf32> to vector<8x8xf32>
    %45 = arith.mulf %40, %44 : vector<8x8xf32>
    %46 = arith.truncf %45 : vector<8x8xf32> to vector<8x8xbf16>
    %cst_26 = arith.constant dense<0.000000e+00> : vector<8x8xf32>
    %47 = tpu.matmul %46, %33, %cst_26 {dimension_numbers = #tpu.dot_dimension_numbers<[1], [0], [0], [1], [0, 0, 1, 1], [], []>} : vector<8x8xbf16>, vector<8x8xbf16>, vector<8x8xf32> -> vector<8x8xf32>
    %c0_27 = arith.constant 0 : index
    %c0_28 = arith.constant 0 : index
    %c0_29 = arith.constant 0 : index
    %c0_30 = arith.constant 0 : index
    %48 = vector.load %arg11[%c0_27, %c0_28, %c0_29, %c0_30] : memref<1x4x8x8xf32, #tpu.memory_space<vmem>>, vector<1x1x8x8xf32>
    %49 = vector.shape_cast %48 : vector<1x1x8x8xf32> to vector<8x8xf32>
    %50 = vector.shape_cast %35 : vector<8x8xf32> to vector<1x1x8x8xf32>
    tpu.vector_store %arg11[%c0_27, %c0_28, %c0_29, %c0_30], %50 {strides = array<i32>} : memref<1x4x8x8xf32, #tpu.memory_space<vmem>>, vector<1x1x8x8xf32>,
    %51 = vector.extract_strided_slice %22 {offsets = [0, 8], sizes = [8, 8], strides = [1, 1]} : vector<8x32xbf16> to vector<8x8xbf16>
    %52 = vector.extract_strided_slice %24 {offsets = [0, 8], sizes = [8, 8], strides = [1, 1]} : vector<8x32xbf16> to vector<8x8xbf16>
    %53 = vector.extract_strided_slice %26 {offsets = [0, 8], sizes = [8, 8], strides = [1, 1]} : vector<8x32xbf16> to vector<8x8xbf16>
    %cst_31 = arith.constant dense<0.000000e+00> : vector<8x8xf32>
    %54 = tpu.matmul %51, %52, %cst_31 {dimension_numbers = #tpu.dot_dimension_numbers<[1], [1], [0], [0], [0, 0, 1, 0], [], []>} : vector<8x8xbf16>, vector<8x8xbf16>, vector<8x8xf32> -> vector<8x8xf32>
    %55 = arith.addf %54, %30 : vector<8x8xf32>
    %cst_32 = arith.constant dense<0xFF800000> : vector<8xf32>
    %56 = vector.multi_reduction <maximumf>, %55, %cst_32 [1] : vector<8x8xf32> to vector<8xf32>
    %57 = vector.shape_cast %56 : vector<8xf32> to vector<8x1xf32>
    %58 = vector.broadcast %57 : vector<8x1xf32> to vector<8x8xf32>
    %59 = arith.subf %55, %58 : vector<8x8xf32>
    %60 = math.exp %59 : vector<8x8xf32>
    %cst_33 = arith.constant dense<0.000000e+00> : vector<8xf32>
    %61 = vector.multi_reduction <add>, %60, %cst_33 [1] : vector<8x8xf32> to vector<8xf32>
    %62 = vector.shape_cast %61 : vector<8xf32> to vector<8x1xf32>
    %63 = tpu.reciprocal %62 {approx = true} : vector<8x1xf32> -> vector<8x1xf32>
    %64 = vector.broadcast %63 : vector<8x1xf32> to vector<8x8xf32>
    %65 = arith.mulf %60, %64 : vector<8x8xf32>
    %66 = arith.truncf %65 : vector<8x8xf32> to vector<8x8xbf16>
    %cst_34 = arith.constant dense<0.000000e+00> : vector<8x8xf32>
    %67 = tpu.matmul %66, %53, %cst_34 {dimension_numbers = #tpu.dot_dimension_numbers<[1], [0], [0], [1], [0, 0, 1, 1], [], []>} : vector<8x8xbf16>, vector<8x8xbf16>, vector<8x8xf32> -> vector<8x8xf32>
    %c0_35 = arith.constant 0 : index
    %c1 = arith.constant 1 : index
    %c0_36 = arith.constant 0 : index
    %c0_37 = arith.constant 0 : index
    %68 = vector.load %arg11[%c0_35, %c1, %c0_36, %c0_37] : memref<1x4x8x8xf32, #tpu.memory_space<vmem>>, vector<1x1x8x8xf32>
    %69 = vector.shape_cast %68 : vector<1x1x8x8xf32> to vector<8x8xf32>
    %70 = vector.shape_cast %55 : vector<8x8xf32> to vector<1x1x8x8xf32>
    tpu.vector_store %arg11[%c0_35, %c1, %c0_36, %c0_37], %70 {strides = array<i32>} : memref<1x4x8x8xf32, #tpu.memory_space<vmem>>, vector<1x1x8x8xf32>,
    %71 = vector.extract_strided_slice %22 {offsets = [0, 16], sizes = [8, 8], strides = [1, 1]} : vector<8x32xbf16> to vector<8x8xbf16>
    %72 = vector.extract_strided_slice %24 {offsets = [0, 16], sizes = [8, 8], strides = [1, 1]} : vector<8x32xbf16> to vector<8x8xbf16>
    %73 = vector.extract_strided_slice %26 {offsets = [0, 16], sizes = [8, 8], strides = [1, 1]} : vector<8x32xbf16> to vector<8x8xbf16>
    %cst_38 = arith.constant dense<0.000000e+00> : vector<8x8xf32>
    %74 = tpu.matmul %71, %72, %cst_38 {dimension_numbers = #tpu.dot_dimension_numbers<[1], [1], [0], [0], [0, 0, 1, 0], [], []>} : vector<8x8xbf16>, vector<8x8xbf16>, vector<8x8xf32> -> vector<8x8xf32>
    %75 = arith.addf %74, %30 : vector<8x8xf32>
    %cst_39 = arith.constant dense<0xFF800000> : vector<8xf32>
    %76 = vector.multi_reduction <maximumf>, %75, %cst_39 [1] : vector<8x8xf32> to vector<8xf32>
    %77 = vector.shape_cast %76 : vector<8xf32> to vector<8x1xf32>
    %78 = vector.broadcast %77 : vector<8x1xf32> to vector<8x8xf32>
    %79 = arith.subf %75, %78 : vector<8x8xf32>
    %80 = math.exp %79 : vector<8x8xf32>
    %cst_40 = arith.constant dense<0.000000e+00> : vector<8xf32>
    %81 = vector.multi_reduction <add>, %80, %cst_40 [1] : vector<8x8xf32> to vector<8xf32>
    %82 = vector.shape_cast %81 : vector<8xf32> to vector<8x1xf32>
    %83 = tpu.reciprocal %82 {approx = true} : vector<8x1xf32> -> vector<8x1xf32>
    %84 = vector.broadcast %83 : vector<8x1xf32> to vector<8x8xf32>
    %85 = arith.mulf %80, %84 : vector<8x8xf32>
    %86 = arith.truncf %85 : vector<8x8xf32> to vector<8x8xbf16>
    %cst_41 = arith.constant dense<0.000000e+00> : vector<8x8xf32>
    %87 = tpu.matmul %86, %73, %cst_41 {dimension_numbers = #tpu.dot_dimension_numbers<[1], [0], [0], [1], [0, 0, 1, 1], [], []>} : vector<8x8xbf16>, vector<8x8xbf16>, vector<8x8xf32> -> vector<8x8xf32>
    %c0_42 = arith.constant 0 : index
    %c2 = arith.constant 2 : index
    %c0_43 = arith.constant 0 : index
    %c0_44 = arith.constant 0 : index
    %88 = vector.load %arg11[%c0_42, %c2, %c0_43, %c0_44] : memref<1x4x8x8xf32, #tpu.memory_space<vmem>>, vector<1x1x8x8xf32>
    %89 = vector.shape_cast %88 : vector<1x1x8x8xf32> to vector<8x8xf32>
    %90 = vector.shape_cast %75 : vector<8x8xf32> to vector<1x1x8x8xf32>
    tpu.vector_store %arg11[%c0_42, %c2, %c0_43, %c0_44], %90 {strides = array<i32>} : memref<1x4x8x8xf32, #tpu.memory_space<vmem>>, vector<1x1x8x8xf32>,
    %91 = vector.extract_strided_slice %22 {offsets = [0, 24], sizes = [8, 8], strides = [1, 1]} : vector<8x32xbf16> to vector<8x8xbf16>
    %92 = vector.extract_strided_slice %24 {offsets = [0, 24], sizes = [8, 8], strides = [1, 1]} : vector<8x32xbf16> to vector<8x8xbf16>
    %93 = vector.extract_strided_slice %26 {offsets = [0, 24], sizes = [8, 8], strides = [1, 1]} : vector<8x32xbf16> to vector<8x8xbf16>
    %cst_45 = arith.constant dense<0.000000e+00> : vector<8x8xf32>
    %94 = tpu.matmul %91, %92, %cst_45 {dimension_numbers = #tpu.dot_dimension_numbers<[1], [1], [0], [0], [0, 0, 1, 0], [], []>} : vector<8x8xbf16>, vector<8x8xbf16>, vector<8x8xf32> -> vector<8x8xf32>
    %95 = arith.addf %94, %30 : vector<8x8xf32>
    %cst_46 = arith.constant dense<0xFF800000> : vector<8xf32>
    %96 = vector.multi_reduction <maximumf>, %95, %cst_46 [1] : vector<8x8xf32> to vector<8xf32>
    %97 = vector.shape_cast %96 : vector<8xf32> to vector<8x1xf32>
    %98 = vector.broadcast %97 : vector<8x1xf32> to vector<8x8xf32>
    %99 = arith.subf %95, %98 : vector<8x8xf32>
    %100 = math.exp %99 : vector<8x8xf32>
    %cst_47 = arith.constant dense<0.000000e+00> : vector<8xf32>
    %101 = vector.multi_reduction <add>, %100, %cst_47 [1] : vector<8x8xf32> to vector<8xf32>
    %102 = vector.shape_cast %101 : vector<8xf32> to vector<8x1xf32>
    %103 = tpu.reciprocal %102 {approx = true} : vector<8x1xf32> -> vector<8x1xf32>
    %104 = vector.broadcast %103 : vector<8x1xf32> to vector<8x8xf32>
    %105 = arith.mulf %100, %104 : vector<8x8xf32>
    %106 = arith.truncf %105 : vector<8x8xf32> to vector<8x8xbf16>
    %cst_48 = arith.constant dense<0.000000e+00> : vector<8x8xf32>
    %107 = tpu.matmul %106, %93, %cst_48 {dimension_numbers = #tpu.dot_dimension_numbers<[1], [0], [0], [1], [0, 0, 1, 1], [], []>} : vector<8x8xbf16>, vector<8x8xbf16>, vector<8x8xf32> -> vector<8x8xf32>
    %c0_49 = arith.constant 0 : index
    %c3 = arith.constant 3 : index
    %c0_50 = arith.constant 0 : index
    %c0_51 = arith.constant 0 : index
    %108 = vector.load %arg11[%c0_49, %c3, %c0_50, %c0_51] : memref<1x4x8x8xf32, #tpu.memory_space<vmem>>, vector<1x1x8x8xf32>
    %109 = vector.shape_cast %108 : vector<1x1x8x8xf32> to vector<8x8xf32>
    %110 = vector.shape_cast %95 : vector<8x8xf32> to vector<1x1x8x8xf32>
    tpu.vector_store %arg11[%c0_49, %c3, %c0_50, %c0_51], %110 {strides = array<i32>} : memref<1x4x8x8xf32, #tpu.memory_space<vmem>>, vector<1x1x8x8xf32>,
    %111 = tpu.concatenate %47, %67, %87, %107 in 1 : vector<8x8xf32>, vector<8x8xf32>, vector<8x8xf32>, vector<8x8xf32> -> vector<8x32xf32>
    %c0_52 = arith.constant 0 : index
    %c0_53 = arith.constant 0 : index
    %c0_54 = arith.constant 0 : index
    %112 = vector.load %arg10[%c0_52, %c0_53, %c0_54] : memref<1x8x32xf32, #tpu.memory_space<vmem>>, vector<1x8x32xf32>
    %113 = vector.shape_cast %112 : vector<1x8x32xf32> to vector<8x32xf32>
    %114 = vector.shape_cast %111 : vector<8x32xf32> to vector<1x8x32xf32>
    tpu.vector_store %arg10[%c0_52, %c0_53, %c0_54], %114 {strides = array<i32>} : memref<1x8x32xf32, #tpu.memory_space<vmem>>, vector<1x8x32xf32>,
    return
  }
  func.func @transform_0(%arg0: i32, %arg1: i32, %arg2: i32) -> (i32, i32, i32) {
    %c0_i32 = arith.constant 0 : i32
    %c0_i32_0 = arith.constant 0 : i32
    return %arg1, %arg2, %c0_i32 : i32, i32, i32
  }
  func.func @transform_1(%arg0: i32, %arg1: i32, %arg2: i32) -> (i32, i32, i32) {
    %c0_i32 = arith.constant 0 : i32
    %c0_i32_0 = arith.constant 0 : i32
    %c0_i32_1 = arith.constant 0 : i32
    return %arg1, %c0_i32, %c0_i32_0 : i32, i32, i32
  }
  func.func @transform_2(%arg0: i32, %arg1: i32, %arg2: i32) -> (i32, i32, i32) {
    %c0_i32 = arith.constant 0 : i32
    %c0_i32_0 = arith.constant 0 : i32
    %c0_i32_1 = arith.constant 0 : i32
    return %arg0, %c0_i32, %c0_i32_0 : i32, i32, i32
  }
  func.func @transform_3(%arg0: i32, %arg1: i32, %arg2: i32) -> (i32, i32, i32) {
    %c0_i32 = arith.constant 0 : i32
    %c0_i32_0 = arith.constant 0 : i32
    %c0_i32_1 = arith.constant 0 : i32
    return %arg0, %c0_i32, %c0_i32_0 : i32, i32, i32
  }
  func.func @transform_4(%arg0: i32, %arg1: i32, %arg2: i32) -> (i32, i32, i32) {
    %c0_i32 = arith.constant 0 : i32
    %c0_i32_0 = arith.constant 0 : i32
    %c0_i32_1 = arith.constant 0 : i32
    return %arg0, %c0_i32, %c0_i32_0 : i32, i32, i32
  }
  func.func @transform_5(%arg0: i32, %arg1: i32, %arg2: i32) -> (i32, i32, i32) {
    %c0_i32 = arith.constant 0 : i32
    %c0_i32_0 = arith.constant 0 : i32
    %c0_i32_1 = arith.constant 0 : i32
    return %arg0, %c0_i32, %c0_i32_0 : i32, i32, i32
  }
  func.func @transform_6(%arg0: i32, %arg1: i32, %arg2: i32) -> (i32, i32, i32, i32) {
    %c0_i32 = arith.constant 0 : i32
    %c0_i32_0 = arith.constant 0 : i32
    %c0_i32_1 = arith.constant 0 : i32
    %c0_i32_2 = arith.constant 0 : i32
    return %arg1, %c0_i32, %c0_i32_0, %c0_i32_1 : i32, i32, i32, i32
  }
  func.func @transform_7(%arg0: i32, %arg1: i32, %arg2: i32) -> (i32, i32, i32) {
    %c0_i32 = arith.constant 0 : i32
    return %arg1, %arg2, %arg0 : i32, i32, i32
  }
  func.func @transform_8(%arg0: i32, %arg1: i32, %arg2: i32) -> (i32, i32, i32, i32) {
    %c0_i32 = arith.constant 0 : i32
    %c0_i32_0 = arith.constant 0 : i32
    return %arg1, %arg0, %arg2, %c0_i32 : i32, i32, i32, i32
  }
}

</mosaic_0001>

<llo_original>
// kernel: tpu_custom_call.1
$region0: #{tpu_custom_call.1}
  #allocation0 [shape = 'u32[]', space=smem, size = 0x4, offset = 0x4, fixed_abs, tag = 'smem constant byte address 0x4 - core index']
  #allocation1 [shape = 'u32[144,128]{1,0:T(1,128)}', space=vmem, size = 0x12000, scoped, tag = 'internal scratch']
  %s0 = inlined_call_operand.hbm [shape: f32[2,8,32], index: 0, kind: input, shape index: {}]
  %s1 = inlined_call_operand.hbm [shape: f32[2,8,32], index: 1, kind: input, shape index: {}]
  %s2 = inlined_call_operand.hbm [shape: bf16[1,32,32], index: 2, kind: input, shape index: {}]
  %s3 = inlined_call_operand.vmem [shape: f32[1,1,32], index: 3, kind: input, shape index: {}]
  %s4 = inlined_call_operand.hbm [shape: bf16[1,32,64], index: 4, kind: input, shape index: {}]
  %s5 = inlined_call_operand.vmem [shape: f32[1,1,64], index: 5, kind: input, shape index: {}]
  %s6 = inlined_call_operand.vmem [shape: f32[2,1,1,8], index: 6, kind: input, shape index: {}]
  %s7 = inlined_call_operand.hbm [shape: f32[2,8,32], index: 7, kind: output, shape index: {0}]
  %s8 = inlined_call_operand.hbm [shape: f32[2,4,8,8], index: 8, kind: output, shape index: {1}]
  %9 = xla_tuple %s7, %s8
  %s10 = sld [smem:[#allocation0]]
  $region85: #{tpu_custom_call.1} parent=0
    _
  %s12 = ssub.s32 1, %s10
  %s13 = scalar_select 0, %s12, %s10
  $region1: #{tpu_custom_call.1} parent=0
    #allocation2 [shape = 'u8[8192]{0}', space=vmem, size = 0x2000, scoped, tag = 'input window, operand 0']
    #allocation3 [shape = 's32[2]{0}', space=sflag, size = 0x8, scoped, tag = 'scoped memory for tpu_custom_call.1']
    #allocation4 [shape = 's32[2]{0}', space=sflag, size = 0x8, scoped, tag = 'scoped memory for tpu_custom_call.1']
    #allocation5 [shape = 'u8[8192]{0}', space=vmem, size = 0x2000, scoped, tag = 'input window, operand 1']
    #allocation6 [shape = 's32[2]{0}', space=sflag, size = 0x8, scoped, tag = 'scoped memory for tpu_custom_call.1']
    #allocation7 [shape = 'u8[8192]{0}', space=vmem, size = 0x2000, scoped, tag = 'input window, operand 2, single buffered']
    #allocation8 [shape = 'u8[8192]{0}', space=vmem, size = 0x2000, scoped, tag = 'input window, operand 4, single buffered']
    #allocation9 [shape = 's32[1]{0}', space=sflag, size = 0x4, scoped, tag = 'scoped memory for tpu_custom_call.1']
    #allocation10 [shape = 'u8[8192]{0}', space=vmem, size = 0x2000, scoped, tag = 'output window, operand 0']
    #allocation11 [shape = 'u8[32768]{0}', space=vmem, size = 0x8000, scoped, tag = 'output window, operand 1']
    #allocation12 [shape = 's32[2]{0}', space=sflag, size = 0x8, scoped, tag = 'scoped memory for tpu_custom_call.1']
    %14 = vsyncpa [#allocation3], 0
    %s15 = scalar_lea.sflag [#allocation3], 1
    %16 = vsyncpa %s15, 0
    %17 = vsyncpa [#allocation6], 0
    %s18 = scalar_lea.sflag [#allocation6], 1
    %19 = vsyncpa %s18, 0
    %20 = vsyncpa [#allocation9], 0
    %21 = vsyncpa [#allocation4], 0
    %s22 = scalar_lea.sflag [#allocation4], 1
    %23 = vsyncpa %s22, 0
    %24 = vsyncpa [#allocation12], 0
    %s25 = scalar_lea.sflag [#allocation12], 1
    %26 = vsyncpa %s25, 0
    loop: start=0, step=1, limit=4
    $region2: #{tpu_custom_call.1} parent=1 // loop_pre_header
      _
    $region3: #{tpu_custom_call.1} parent=1 // loop_header
      %s28 = sphi 0, %s32
      %p29 = scmp.ge.s32.totalorder %s28, 4
      %s35 = sphi 0, %s54
      %s36 = sphi 0, %s50
      %s37 = sphi 0, %s46
      %s38 = sphi 0, %s35
      %s39 = sphi 0, %s36
      %s40 = sphi 0, %s37
      %s41 = sphi 0, %s38
      %s42 = sphi 0, %s39
      %s43 = sphi 0, %s40
      %s59 = sphi 0, %s61
      %s62 = sphi 0, %s59
      %s63 = sphi 0, %s62
      %s79 = sphi 0, %s63
      %s85 = sphi 0, %s87
      %s88 = sphi 0, %s85
      %s89 = sphi 0, %s88
      %s105 = sphi 0, %s89
      %s111 = sphi 0, %s113
      %s114 = sphi 0, %s111
      %s115 = sphi 0, %s114
      %s131 = sphi 0, %s115
      %s137 = sphi 0, %s139
      %s140 = sphi 0, %s137
      %s141 = sphi 0, %s140
      %s157 = sphi 0, %s141
      %s163 = sphi 0, %s165
      %s166 = sphi 0, %s163
      %s167 = sphi 0, %s166
      %s183 = sphi 0, %s167
      %s189 = sphi 0, %s191
      %s192 = sphi 0, %s189
      %s193 = sphi 0, %s192
      %s209 = sphi 0, %s193
      %s215 = sphi 0, %s217
      %s218 = sphi 0, %s215
      %s219 = sphi 0, %s218
      %s235 = sphi 0, %s219
      %s245 = sphi 0, %s247
      %s248 = sphi 0, %s245
      %s249 = sphi 0, %s248
      %s265 = sphi 0, %s249
      %s275 = sphi 0, %s277
      %s278 = sphi 0, %s275
      %s279 = sphi 0, %s278
      %s295 = sphi 0, %s279
    $region4: #{tpu_custom_call.1} parent=1 // loop_header_branch
      %31 = sbr.rel (%p29) target = $region8
    $region5: #{tpu_custom_call.1} parent=1 // loop_body
      %s33 = ssub.s32 %s28, 1
      %s34 = ssub.s32 %s28, 2
      %s44 = sadd.s32 1, %s37
      %p45 = scmp.ge.s32.totalorder %s44, 1
      %s46 = scalar_select %p45, 0, %s44
      %s47 = sadd.s32 1, %s36
      %s48 = scalar_select %p45, %s47, %s36
      %p49 = scmp.ge.s32.totalorder %s48, 2
      %s50 = scalar_select %p49, 0, %s48
      %s51 = sadd.s32 1, %s35
      %s52 = scalar_select %p49, %s51, %s35
      %p53 = scmp.ge.s32.totalorder %s52, 1
      %s54 = scalar_select %p53, 0, %s52
      %s55 = ssub.s32 %s36, %s50
      %s56 = ssub.s32 %s37, %s46
      %s57 = sor.u32 %s55, %s56
      %p58 = scmp.eq.s32.totalorder %s57, 0
      %s60 = sadd.s32 %s59, 1
      %s61 = scalar_select %p58, %s59, %s60
      %p64 = pneg %p58
      %p65 = scmp.eq.s32.totalorder %s28, 1
      %p66 = por %p64, %p65
      %p67 = scmp.ne.s32.totalorder %s59, %s62
      %p68 = scmp.eq.s32.totalorder %s28, 0
      %p69 = por %p67, %p68
      %p70 = scmp.ne.s32.totalorder %s59, %s62
      %p71 = scmp.eq.s32.totalorder %s33, 1
      %p72 = por %p70, %p71
      %p73 = scmp.ne.s32.totalorder %s62, %s63
      %p74 = scmp.eq.s32.totalorder %s33, 0
      %p75 = por %p73, %p74
      %p76 = scmp.ne.s32.totalorder %s62, %s63
      %p77 = scmp.eq.s32.totalorder %s34, 1
      %p78 = por %p76, %p77
      %p80 = scmp.ne.s32.totalorder %s63, %s79
      %p81 = scmp.eq.s32.totalorder %s34, 0
      %p82 = por %p80, %p81
      %s83 = ssub.s32 %s36, %s50
      %p84 = scmp.eq.s32.totalorder %s83, 0
      %s86 = sadd.s32 %s85, 1
      %s87 = scalar_select %p84, %s85, %s86
      %p90 = pneg %p84
      %p91 = scmp.eq.s32.totalorder %s28, 1
      %p92 = por %p90, %p91
      %p93 = scmp.ne.s32.totalorder %s85, %s88
      %p94 = scmp.eq.s32.totalorder %s28, 0
      %p95 = por %p93, %p94
      %p96 = scmp.ne.s32.totalorder %s85, %s88
      %p97 = scmp.eq.s32.totalorder %s33, 1
      %p98 = por %p96, %p97
      %p99 = scmp.ne.s32.totalorder %s88, %s89
      %p100 = scmp.eq.s32.totalorder %s33, 0
      %p101 = por %p99, %p100
      %p102 = scmp.ne.s32.totalorder %s88, %s89
      %p103 = scmp.eq.s32.totalorder %s34, 1
      %p104 = por %p102, %p103
      %p106 = scmp.ne.s32.totalorder %s89, %s105
      %p107 = scmp.eq.s32.totalorder %s34, 0
      %p108 = por %p106, %p107
      %s109 = ssub.s32 %s35, %s54
      %p110 = scmp.eq.s32.totalorder %s109, 0
      %s112 = sadd.s32 %s111, 1
      %s113 = scalar_select %p110, %s111, %s112
      %p116 = pneg %p110
      %p117 = scmp.eq.s32.totalorder %s28, 1
      %p118 = por %p116, %p117
      %p119 = scmp.ne.s32.totalorder %s111, %s114
      %p120 = scmp.eq.s32.totalorder %s28, 0
      %p121 = por %p119, %p120
      %p122 = scmp.ne.s32.totalorder %s111, %s114
      %p123 = scmp.eq.s32.totalorder %s33, 1
      %p124 = por %p122, %p123
      %p125 = scmp.ne.s32.totalorder %s114, %s115
      %p126 = scmp.eq.s32.totalorder %s33, 0
      %p127 = por %p125, %p126
      %p128 = scmp.ne.s32.totalorder %s114, %s115
      %p129 = scmp.eq.s32.totalorder %s34, 1
      %p130 = por %p128, %p129
      %p132 = scmp.ne.s32.totalorder %s115, %s131
      %p133 = scmp.eq.s32.totalorder %s34, 0
      %p134 = por %p132, %p133
      %s135 = ssub.s32 %s35, %s54
      %p136 = scmp.eq.s32.totalorder %s135, 0
      %s138 = sadd.s32 %s137, 1
      %s139 = scalar_select %p136, %s137, %s138
      %p142 = pneg %p136
      %p143 = scmp.eq.s32.totalorder %s28, 1
      %p144 = por %p142, %p143
      %p145 = scmp.ne.s32.totalorder %s137, %s140
      %p146 = scmp.eq.s32.totalorder %s28, 0
      %p147 = por %p145, %p146
      %p148 = scmp.ne.s32.totalorder %s137, %s140
      %p149 = scmp.eq.s32.totalorder %s33, 1
      %p150 = por %p148, %p149
      %p151 = scmp.ne.s32.totalorder %s140, %s141
      %p152 = scmp.eq.s32.totalorder %s33, 0
      %p153 = por %p151, %p152
      %p154 = scmp.ne.s32.totalorder %s140, %s141
      %p155 = scmp.eq.s32.totalorder %s34, 1
      %p156 = por %p154, %p155
      %p158 = scmp.ne.s32.totalorder %s141, %s157
      %p159 = scmp.eq.s32.totalorder %s34, 0
      %p160 = por %p158, %p159
      %s161 = ssub.s32 %s35, %s54
      %p162 = scmp.eq.s32.totalorder %s161, 0
      %s164 = sadd.s32 %s163, 1
      %s165 = scalar_select %p162, %s163, %s164
      %p168 = pneg %p162
      %p169 = scmp.eq.s32.totalorder %s28, 1
      %p170 = por %p168, %p169
      %p171 = scmp.ne.s32.totalorder %s163, %s166
      %p172 = scmp.eq.s32.totalorder %s28, 0
      %p173 = por %p171, %p172
      %p174 = scmp.ne.s32.totalorder %s163, %s166
      %p175 = scmp.eq.s32.totalorder %s33, 1
      %p176 = por %p174, %p175
      %p177 = scmp.ne.s32.totalorder %s166, %s167
      %p178 = scmp.eq.s32.totalorder %s33, 0
      %p179 = por %p177, %p178
      %p180 = scmp.ne.s32.totalorder %s166, %s167
      %p181 = scmp.eq.s32.totalorder %s34, 1
      %p182 = por %p180, %p181
      %p184 = scmp.ne.s32.totalorder %s167, %s183
      %p185 = scmp.eq.s32.totalorder %s34, 0
      %p186 = por %p184, %p185
      %s187 = ssub.s32 %s35, %s54
      %p188 = scmp.eq.s32.totalorder %s187, 0
      %s190 = sadd.s32 %s189, 1
      %s191 = scalar_select %p188, %s189, %s190
      %p194 = pneg %p188
      %p195 = scmp.eq.s32.totalorder %s28, 1
      %p196 = por %p194, %p195
      %p197 = scmp.ne.s32.totalorder %s189, %s192
      %p198 = scmp.eq.s32.totalorder %s28, 0
      %p199 = por %p197, %p198
      %p200 = scmp.ne.s32.totalorder %s189, %s192
      %p201 = scmp.eq.s32.totalorder %s33, 1
      %p202 = por %p200, %p201
      %p203 = scmp.ne.s32.totalorder %s192, %s193
      %p204 = scmp.eq.s32.totalorder %s33, 0
      %p205 = por %p203, %p204
      %p206 = scmp.ne.s32.totalorder %s192, %s193
      %p207 = scmp.eq.s32.totalorder %s34, 1
      %p208 = por %p206, %p207
      %p210 = scmp.ne.s32.totalorder %s193, %s209
      %p211 = scmp.eq.s32.totalorder %s34, 0
      %p212 = por %p210, %p211
      %s213 = ssub.s32 %s36, %s50
      %p214 = scmp.eq.s32.totalorder %s213, 0
      %s216 = sadd.s32 %s215, 1
      %s217 = scalar_select %p214, %s215, %s216
      %p220 = pneg %p214
      %p221 = scmp.eq.s32.totalorder %s28, 1
      %p222 = por %p220, %p221
      %p223 = scmp.ne.s32.totalorder %s215, %s218
      %p224 = scmp.eq.s32.totalorder %s28, 0
      %p225 = por %p223, %p224
      %p226 = scmp.ne.s32.totalorder %s215, %s218
      %p227 = scmp.eq.s32.totalorder %s33, 1
      %p228 = por %p226, %p227
      %p229 = scmp.ne.s32.totalorder %s218, %s219
      %p230 = scmp.eq.s32.totalorder %s33, 0
      %p231 = por %p229, %p230
      %p232 = scmp.ne.s32.totalorder %s218, %s219
      %p233 = scmp.eq.s32.totalorder %s34, 1
      %p234 = por %p232, %p233
      %p236 = scmp.ne.s32.totalorder %s219, %s235
      %p237 = scmp.eq.s32.totalorder %s34, 0
      %p238 = por %p236, %p237
      %s239 = ssub.s32 %s36, %s50
      %s240 = ssub.s32 %s37, %s46
      %s241 = sor.u32 %s239, %s240
      %s242 = ssub.s32 %s35, %s54
      %s243 = sor.u32 %s241, %s242
      %p244 = scmp.eq.s32.totalorder %s243, 0
      %s246 = sadd.s32 %s245, 1
      %s247 = scalar_select %p244, %s245, %s246
      %p250 = pneg %p244
      %p251 = scmp.eq.s32.totalorder %s28, 1
      %p252 = por %p250, %p251
      %p253 = scmp.ne.s32.totalorder %s245, %s248
      %p254 = scmp.eq.s32.totalorder %s28, 0
      %p255 = por %p253, %p254
      %p256 = scmp.ne.s32.totalorder %s245, %s248
      %p257 = scmp.eq.s32.totalorder %s33, 1
      %p258 = por %p256, %p257
      %p259 = scmp.ne.s32.totalorder %s248, %s249
      %p260 = scmp.eq.s32.totalorder %s33, 0
      %p261 = por %p259, %p260
      %p262 = scmp.ne.s32.totalorder %s248, %s249
      %p263 = scmp.eq.s32.totalorder %s34, 1
      %p264 = por %p262, %p263
      %p266 = scmp.ne.s32.totalorder %s249, %s265
      %p267 = scmp.eq.s32.totalorder %s34, 0
      %p268 = por %p266, %p267
      %s269 = ssub.s32 %s36, %s50
      %s270 = ssub.s32 %s35, %s54
      %s271 = sor.u32 %s269, %s270
      %s272 = ssub.s32 %s37, %s46
      %s273 = sor.u32 %s271, %s272
      %p274 = scmp.eq.s32.totalorder %s273, 0
      %s276 = sadd.s32 %s275, 1
      %s277 = scalar_select %p274, %s275, %s276
      %p280 = pneg %p274
      %p281 = scmp.eq.s32.totalorder %s28, 1
      %p282 = por %p280, %p281
      %p283 = scmp.ne.s32.totalorder %s275, %s278
      %p284 = scmp.eq.s32.totalorder %s28, 0
      %p285 = por %p283, %p284
      %p286 = scmp.ne.s32.totalorder %s275, %s278
      %p287 = scmp.eq.s32.totalorder %s33, 1
      %p288 = por %p286, %p287
      %p289 = scmp.ne.s32.totalorder %s278, %s279
      %p290 = scmp.eq.s32.totalorder %s33, 0
      %p291 = por %p289, %p290
      %p292 = scmp.ne.s32.totalorder %s278, %s279
      %p293 = scmp.eq.s32.totalorder %s34, 1
      %p294 = por %p292, %p293
      %p296 = scmp.ne.s32.totalorder %s279, %s295
      %p297 = scmp.eq.s32.totalorder %s34, 0
      %p298 = por %p296, %p297
      %p299 = scmp.le.s32.totalorder 1, %s28
      %p300 = scmp.lt.s32.totalorder %s28, 3
      %p301 = pnand %p299, %p300
      %p302 = pneg %p301
      // Predicated region
      $region9: #{tpu_custom_call.1} parent=5 // pred_check
        _
      $region10: #{tpu_custom_call.1} parent=5 // pred_check_branch
        %304 = sbr.rel (%p301) target = $region12
      $region11: #{tpu_custom_call.1} parent=5 // pred_region
        %s305 = ssub.s32 %s28, 1
        // Predicated region
        $region13: #{tpu_custom_call.1} parent=11 // pred_check
          %p306 = pneg %p127
        $region14: #{tpu_custom_call.1} parent=11 // pred_check_branch
          %308 = sbr.rel (%p306) target = $region16
        $region15: #{tpu_custom_call.1} parent=11 // pred_region
          %s310 = ssub.s32 256, 256
          %311 = vsyncadd [#allocation6], %s310
          %s312 = smul.addr %s38, 4
          %s313 = smul.addr %s312, 64
          %s314 = scalar_lea.hbm %s2, %s313
          %s315 = sshll.u32 [#allocation7], 4
          %s316 = int_to_ptr.vmem [resolvable:$true] %s315
          %321 = dma.hbm_to_vmem [thread:$0]  %s314, 256, %s316, [#allocation6], 64, 64, 4
        $region16: #{tpu_custom_call.1} parent=11 // pred_fallthru
          _
        // Predicated region
        $region17: #{tpu_custom_call.1} parent=11 // pred_check
          %p322 = pneg %p153
        $region18: #{tpu_custom_call.1} parent=11 // pred_check_branch
          %324 = sbr.rel (%p322) target = $region20
        $region19: #{tpu_custom_call.1} parent=11 // pred_region
          %p325 = scmp.lt.s32.totalorder %s38, 0
          %s326 = scalar_select %p325, %s38, 0
          %s327 = scalar_lea.vmem %s3, %s326
        $region20: #{tpu_custom_call.1} parent=11 // pred_fallthru
          _
        // Predicated region
        $region21: #{tpu_custom_call.1} parent=11 // pred_check
          %p328 = pneg %p179
        $region22: #{tpu_custom_call.1} parent=11 // pred_check_branch
          %330 = sbr.rel (%p328) target = $region24
        $region23: #{tpu_custom_call.1} parent=11 // pred_region
          %s332 = ssub.s32 256, 256
          %333 = vsyncadd [#allocation9], %s332
          %s334 = smul.addr %s38, 4
          %s335 = smul.addr %s334, 64
          %s336 = scalar_lea.hbm %s4, %s335
          %s337 = sshll.u32 [#allocation8], 4
          %s338 = int_to_ptr.vmem [resolvable:$true] %s337
          %343 = dma.hbm_to_vmem [thread:$0]  %s336, 256, %s338, [#allocation9], 64, 64, 4
        $region24: #{tpu_custom_call.1} parent=11 // pred_fallthru
          _
        // Predicated region
        $region25: #{tpu_custom_call.1} parent=11 // pred_check
          %p344 = pneg %p205
        $region26: #{tpu_custom_call.1} parent=11 // pred_check_branch
          %346 = sbr.rel (%p344) target = $region28
        $region27: #{tpu_custom_call.1} parent=11 // pred_region
          %p347 = scmp.lt.s32.totalorder %s38, 0
          %s348 = scalar_select %p347, %s38, 0
          %s349 = scalar_lea.vmem %s5, %s348
        $region28: #{tpu_custom_call.1} parent=11 // pred_fallthru
          _
      $region12: #{tpu_custom_call.1} parent=5 // pred_fallthru
        _
      %p350 = scmp.lt.s32.totalorder %s28, 2
      // Predicated region
      $region29: #{tpu_custom_call.1} parent=5 // pred_check
        %p351 = pneg %p350
      $region30: #{tpu_custom_call.1} parent=5 // pred_check_branch
        %353 = sbr.rel (%p351) target = $region32
      $region31: #{tpu_custom_call.1} parent=5 // pred_region
        // Predicated region
        $region33: #{tpu_custom_call.1} parent=31 // pred_check
          %p354 = pneg %p69
        $region34: #{tpu_custom_call.1} parent=31 // pred_check_branch
          %356 = sbr.rel (%p354) target = $region36
        $region35: #{tpu_custom_call.1} parent=31 // pred_region
          %s357 = sand.u32 %s59, 1
          %s358 = scalar_lea.sflag [#allocation3], %s357
          %s359 = sand.u32 %s59, 1
          %s360 = smul.addr %s359, 8
          %s361 = scalar_lea.vmem [#allocation2], %s360
          %s363 = ssub.s32 128, 128
          %364 = vsyncadd %s358, %s363
          %s365 = sadd.s32 %s37, %s36
          %s366 = smul.addr %s365, 128
          %s367 = scalar_lea.hbm %s0, %s366
          %s369 = sshll.u32 %s361, 4
          %s370 = int_to_ptr.vmem [resolvable:$true] %s369
          %372 = dma.hbm_to_vmem [thread:$0]  %s367, 128, %s370, %s358
        $region36: #{tpu_custom_call.1} parent=31 // pred_fallthru
          _
        // Predicated region
        $region37: #{tpu_custom_call.1} parent=31 // pred_check
          %p373 = pneg %p95
        $region38: #{tpu_custom_call.1} parent=31 // pred_check_branch
          %375 = sbr.rel (%p373) target = $region40
        $region39: #{tpu_custom_call.1} parent=31 // pred_region
          %s376 = sand.u32 %s28, 1
          %s377 = scalar_lea.sflag [#allocation6], %s376
          %s378 = sand.u32 %s85, 1
          %s379 = smul.addr %s378, 8
          %s380 = scalar_lea.vmem [#allocation5], %s379
          %s382 = ssub.s32 128, 128
          %383 = vsyncadd %s377, %s382
          %s384 = smul.addr %s36, 128
          %s385 = scalar_lea.hbm %s1, %s384
          %s387 = sshll.u32 %s380, 4
          %s388 = int_to_ptr.vmem [resolvable:$true] %s387
          %390 = dma.hbm_to_vmem [thread:$0]  %s385, 128, %s388, %s377
        $region40: #{tpu_custom_call.1} parent=31 // pred_fallthru
          _
        // Predicated region
        $region41: #{tpu_custom_call.1} parent=31 // pred_check
          %p391 = pneg %p225
        $region42: #{tpu_custom_call.1} parent=31 // pred_check_branch
          %393 = sbr.rel (%p391) target = $region44
        $region43: #{tpu_custom_call.1} parent=31 // pred_region
          %p394 = scmp.lt.s32.totalorder %s36, 1
          %s395 = scalar_select %p394, %s36, 1
          %s396 = scalar_lea.vmem %s6, %s395
        $region44: #{tpu_custom_call.1} parent=31 // pred_fallthru
          _
      $region32: #{tpu_custom_call.1} parent=5 // pred_fallthru
        _
      %p397 = scmp.le.s32.totalorder 1, %s28
      %p398 = scmp.lt.s32.totalorder %s28, 3
      %p399 = pnand %p397, %p398
      %p400 = pneg %p399
      // Predicated region
      $region45: #{tpu_custom_call.1} parent=5 // pred_check
        _
      $region46: #{tpu_custom_call.1} parent=5 // pred_check_branch
        %402 = sbr.rel (%p399) target = $region48
      $region47: #{tpu_custom_call.1} parent=5 // pred_region
        %s403 = ssub.s32 %s28, 1
        %s404 = sand.u32 %s62, 1
        %s405 = scalar_lea.sflag [#allocation3], %s404
        %s406 = sand.u32 %s62, 1
        %s407 = smul.addr %s406, 8
        %s408 = scalar_lea.vmem [#allocation2], %s407
        // Predicated region
        $region49: #{tpu_custom_call.1} parent=47 // pred_check
          %p409 = pneg %p75
        $region50: #{tpu_custom_call.1} parent=47 // pred_check_branch
          %411 = sbr.rel (%p409) target = $region52
        $region51: #{tpu_custom_call.1} parent=47 // pred_region
          %412 = dma.done %s405, 128
        $region52: #{tpu_custom_call.1} parent=47 // pred_fallthru
          _
        %s413 = sand.u32 %s33, 1
        %s414 = scalar_lea.sflag [#allocation6], %s413
        %s415 = sand.u32 %s88, 1
        %s416 = smul.addr %s415, 8
        %s417 = scalar_lea.vmem [#allocation5], %s416
        // Predicated region
        $region53: #{tpu_custom_call.1} parent=47 // pred_check
          %p418 = pneg %p101
        $region54: #{tpu_custom_call.1} parent=47 // pred_check_branch
          %420 = sbr.rel (%p418) target = $region56
        $region55: #{tpu_custom_call.1} parent=47 // pred_region
          %421 = dma.done %s414, 128
        $region56: #{tpu_custom_call.1} parent=47 // pred_fallthru
          _
        // Predicated region
        $region57: #{tpu_custom_call.1} parent=47 // pred_check
          %p422 = pneg %p127
        $region58: #{tpu_custom_call.1} parent=47 // pred_check_branch
          %424 = sbr.rel (%p422) target = $region60
        $region59: #{tpu_custom_call.1} parent=47 // pred_region
          %425 = dma.done [#allocation6], 256
        $region60: #{tpu_custom_call.1} parent=47 // pred_fallthru
          _
        // Predicated region
        $region61: #{tpu_custom_call.1} parent=47 // pred_check
          %p426 = pneg %p179
        $region62: #{tpu_custom_call.1} parent=47 // pred_check_branch
          %428 = sbr.rel (%p426) target = $region64
        $region63: #{tpu_custom_call.1} parent=47 // pred_region
          %429 = dma.done [#allocation9], 256
        $region64: #{tpu_custom_call.1} parent=47 // pred_fallthru
          _
        %s430 = sand.u32 %s62, 1
        %s431 = scalar_lea.sflag [#allocation3], %s430
        %s432 = sand.u32 %s62, 1
        %s433 = smul.addr %s432, 8
        %s434 = scalar_lea.vmem [#allocation2], %s433
        %p435 = pneg %p75
        %p436 = pneg %p72
        %s437 = sand.u32 %s33, 1
        %s438 = scalar_lea.sflag [#allocation6], %s437
        %s439 = sand.u32 %s88, 1
        %s440 = smul.addr %s439, 8
        %s441 = scalar_lea.vmem [#allocation5], %s440
        %p442 = pneg %p101
        %p443 = pneg %p98
        %p444 = pneg %p127
        %p445 = pneg %p124
        %p446 = scmp.lt.s32.totalorder %s38, 0
        %s447 = scalar_select %p446, %s38, 0
        %s448 = scalar_lea.vmem %s3, %s447
        %p449 = pneg %p153
        %p450 = pneg %p150
        %p451 = pneg %p179
        %p452 = pneg %p176
        %p453 = scmp.lt.s32.totalorder %s38, 0
        %s454 = scalar_select %p453, %s38, 0
        %s455 = scalar_lea.vmem %s5, %s454
        %p456 = pneg %p205
        %p457 = pneg %p202
        %p458 = scmp.lt.s32.totalorder %s39, 1
        %s459 = scalar_select %p458, %s39, 1
        %s460 = scalar_lea.vmem %s6, %s459
        %p461 = pneg %p231
        %p462 = pneg %p228
        %p463 = pneg %p261
        %p464 = pneg %p258
        %s465 = sand.u32 %s248, 1
        %s466 = scalar_lea.sflag [#allocation4], %s465
        %s467 = sand.u32 %s248, 1
        %s468 = smul.addr %s467, 8
        %s469 = scalar_lea.vmem [#allocation10], %s468
        %p470 = pneg %p291
        %p471 = pneg %p288
        %s472 = sand.u32 %s278, 1
        %s473 = scalar_lea.sflag [#allocation12], %s472
        %s474 = sand.u32 %s278, 1
        %s475 = smul.addr %s474, 32
        %s476 = scalar_lea.vmem [#allocation11], %s475
        %p477 = scmp.lt.s32.totalorder %s38, 0
        %s478 = scalar_select %p477, %s38, 0
        %s479 = scalar_lea.vmem %s3, %s478
        %p480 = scmp.lt.s32.totalorder %s38, 0
        %s481 = scalar_select %p480, %s38, 0
        %s482 = scalar_lea.vmem %s5, %s481
        %p483 = scmp.lt.s32.totalorder %s39, 1
        %s484 = scalar_select %p483, %s39, 1
        %s485 = scalar_lea.vmem %s6, %s484
        %s486 = smul.u32 4, %s38
        %v488 = vld [vmem:[%s408] sm:$0xff]
        %v489 = vpack.c.bf16 %v488, %v488
        %v490 = vld [vmem:[%s417] sm:$0xff]
        %v491 = vpack.c.bf16 %v490, %v490
        %v492 = vld [vmem:[#allocation7] sm:$0xf]
        %v493 = vld [vmem:[#allocation7 + $0x4] sm:$0xf]
        %v494 = vld [vmem:[#allocation7 + $0x8] sm:$0xf]
        %v495 = vld [vmem:[#allocation7 + $0xc] sm:$0xf]
        %v496 = vld [vmem:[%s479] sm:$0x1]
        %v498 = vlaneseq
        %v499 = vshrl.u32 %v498, 7
        %v500 = vsub.s32 0, %v499
        %v501 = vrot.slane %v496, %v500
        %v507 = vunpack.c.l.b16 %v492
        %v508 = vunpack.c.l.b16 %v493
        %v509 = vunpack.c.l.b16 %v494
        %v510 = vunpack.c.l.b16 %v495
        %v511 = vpack.c.b16 %v508, %v507
        %v512 = vpack.c.b16 %v510, %v509
        %vm515 = vcmask 261120
        %v517 = vsel %vm515, %v489, 0
        %519 = vmatprep.subr.bf16.mxu0 0
        %520 = vmatpush1.bf16.msra.mxu0 0
        %521 = vmatprep.subr.bf16.mxu0 0
        %522 = vmatpush1.bf16.msra.mxu0 0
        %523 = vmatprep.subr.bf16.mxu0 0
        %524 = vmatpush1.bf16.msra.mxu0 0
        %525 = vmatprep.subr.bf16.mxu0 0
        %526 = vmatpush1.bf16.msra.mxu0 0
        %527 = vmatprep.subr.bf16.mxu0 0
        %528 = vmatpush1.bf16.msra.mxu0 0
        %529 = vmatprep.subr.bf16.mxu0 0
        %530 = vmatpush1.bf16.msra.mxu0 0
        %531 = vmatprep.subr.bf16.mxu0 0
        %532 = vmatpush1.bf16.msra.mxu0 %v512
        %533 = vmatprep.subr.bf16.mxu0 0
        %534 = vmatpush1.bf16.msra.mxu0 %v511
        %535 = vmatprep.subr.bf16.mxu0 0
        %536 = vmatpush2.bf16.msra.mxu0 0
        %537 = vmatprep.subr.bf16.mxu0 0
        %538 = vmatpush2.bf16.msra.mxu0 0
        %539 = vmatprep.subr.bf16.mxu0 0
        %540 = vmatpush2.bf16.msra.mxu0 0
        %541 = vmatprep.subr.bf16.mxu0 0
        %542 = vmatpush2.bf16.msra.mxu0 0
        %543 = vmatprep.subr.bf16.mxu0 0
        %544 = vmatpush2.bf16.msra.mxu0 0
        %545 = vmatprep.subr.bf16.mxu0 0
        %546 = vmatpush2.bf16.msra.mxu0 0
        %547 = vmatprep.subr.bf16.mxu0 0
        %548 = vmatpush2.bf16.msra.mxu0 0
        %549 = vmatprep.subr.bf16.mxu0 0
        %550 = vmatpush2.bf16.msra.mxu0 0
        %551 = vmatprep.mubr.bf16.mxu0 0
        %552 = vmatmul.mubr.bf16.gmra.mxu0 %v517
        %v553 = vpop.f32.mrf.mxu0
        %v554 = vadd.f32 %v501, %v553
        %v555 = vpop.f32.mrf.mxu0
        %v556 = vpop.f32.mrf.mxu0
        %v557 = vpop.f32.mrf.mxu0
        %558 = vdwg.mxu0
        %v559 = vld [vmem:[#allocation8] sm:$0xf]
        %v560 = vld [vmem:[#allocation8 + $0x4] sm:$0xf]
        %v561 = vld [vmem:[#allocation8 + $0x8] sm:$0xf]
        %v562 = vld [vmem:[#allocation8 + $0xc] sm:$0xf]
        %v563 = vld [vmem:[%s482] sm:$0x1]
        %v565 = vlaneseq
        %v566 = vshrl.u32 %v565, 7
        %v567 = vsub.s32 0, %v566
        %v568 = vrot.slane %v563, %v567
        %v574 = vunpack.c.l.b16 %v559
        %v575 = vunpack.c.l.b16 %v560
        %v576 = vunpack.c.l.b16 %v561
        %v577 = vunpack.c.l.b16 %v562
        %v578 = vpack.c.b16 %v575, %v574
        %v579 = vpack.c.b16 %v577, %v576
        %v583 = vsel %vm515, %v491, 0
        %585 = vmatprep.subr.bf16.mxu0 0
        %586 = vmatpush1.bf16.msra.mxu0 0
        %587 = vmatprep.subr.bf16.mxu0 0
        %588 = vmatpush1.bf16.msra.mxu0 0
        %589 = vmatprep.subr.bf16.mxu0 0
        %590 = vmatpush1.bf16.msra.mxu0 0
        %591 = vmatprep.subr.bf16.mxu0 0
        %592 = vmatpush1.bf16.msra.mxu0 0
        %593 = vmatprep.subr.bf16.mxu0 0
        %594 = vmatpush1.bf16.msra.mxu0 0
        %595 = vmatprep.subr.bf16.mxu0 0
        %596 = vmatpush1.bf16.msra.mxu0 0
        %597 = vmatprep.subr.bf16.mxu0 0
        %598 = vmatpush1.bf16.msra.mxu0 %v579
        %599 = vmatprep.subr.bf16.mxu0 0
        %600 = vmatpush1.bf16.msra.mxu0 %v578
        %601 = vmatprep.subr.bf16.mxu0 0
        %602 = vmatpush2.bf16.msra.mxu0 0
        %603 = vmatprep.subr.bf16.mxu0 0
        %604 = vmatpush2.bf16.msra.mxu0 0
        %605 = vmatprep.subr.bf16.mxu0 0
        %606 = vmatpush2.bf16.msra.mxu0 0
        %607 = vmatprep.subr.bf16.mxu0 0
        %608 = vmatpush2.bf16.msra.mxu0 0
        %609 = vmatprep.subr.bf16.mxu0 0
        %610 = vmatpush2.bf16.msra.mxu0 0
        %611 = vmatprep.subr.bf16.mxu0 0
        %612 = vmatpush2.bf16.msra.mxu0 0
        %613 = vmatprep.subr.bf16.mxu0 0
        %614 = vmatpush2.bf16.msra.mxu0 0
        %615 = vmatprep.subr.bf16.mxu0 0
        %616 = vmatpush2.bf16.msra.mxu0 0
        %617 = vmatprep.mubr.bf16.mxu0 0
        %618 = vmatmul.mubr.bf16.gmra.mxu0 %v583
        %v619 = vpop.f32.mrf.mxu0
        %v620 = vadd.f32 %v568, %v619
        %v621 = vpop.f32.mrf.mxu0
        %v622 = vpop.f32.mrf.mxu0
        %v623 = vpop.f32.mrf.mxu0
        %624 = vdwg.mxu0
        %v625 = vmul.f32 %v554, 0.35355338
        %v626 = vpack.c.bf16 %v625, %v625
        %v627 = vpack.c.bf16 %v620, %v620
        %v628 = vld [vmem:[%s485] sm:$0x1]
        %v630 = vlaneseq
        %v631 = vshrl.u32 %v630, 7
        %v632 = vsub.s32 0, %v631
        %v633 = vrot.slane %v628, %v632
        %vm635 = vcmask 64512
        %v637 = vsel %vm635, %v626, 0
        %v640 = vsel %vm635, %v627, 0
        %642 = vmatprep.subr.bf16.mxu0 0
        %643 = vmatpush1.bf16.xpose.msra.mxu0 0
        %644 = vmatprep.subr.bf16.mxu0 0
        %645 = vmatpush1.bf16.xpose.msra.mxu0 0
        %646 = vmatprep.subr.bf16.mxu0 0
        %647 = vmatpush1.bf16.xpose.msra.mxu0 0
        %648 = vmatprep.subr.bf16.mxu0 0
        %649 = vmatpush1.bf16.xpose.msra.mxu0 0
        %650 = vmatprep.subr.bf16.mxu0 0
        %651 = vmatpush1.bf16.xpose.msra.mxu0 0
        %652 = vmatprep.subr.bf16.mxu0 0
        %653 = vmatpush1.bf16.xpose.msra.mxu0 0
        %654 = vmatprep.subr.bf16.mxu0 0
        %655 = vmatpush1.bf16.xpose.msra.mxu0 0
        %656 = vmatprep.subr.bf16.mxu0 0
        %657 = vmatpush1.bf16.xpose.msra.mxu0 %v640
        %658 = vmatprep.subr.bf16.mxu0 0
        %659 = vmatpush2.bf16.xpose.msra.mxu0 0
        %660 = vmatprep.subr.bf16.mxu0 0
        %661 = vmatpush2.bf16.xpose.msra.mxu0 0
        %662 = vmatprep.subr.bf16.mxu0 0
        %663 = vmatpush2.bf16.xpose.msra.mxu0 0
        %664 = vmatprep.subr.bf16.mxu0 0
        %665 = vmatpush2.bf16.xpose.msra.mxu0 0
        %666 = vmatprep.subr.bf16.mxu0 0
        %667 = vmatpush2.bf16.xpose.msra.mxu0 0
        %668 = vmatprep.subr.bf16.mxu0 0
        %669 = vmatpush2.bf16.xpose.msra.mxu0 0
        %670 = vmatprep.subr.bf16.mxu0 0
        %671 = vmatpush2.bf16.xpose.msra.mxu0 0
        %672 = vmatprep.subr.bf16.mxu0 0
        %673 = vmatpush2.bf16.xpose.msra.mxu0 0
        %674 = vmatprep.mubr.bf16.mxu0 0
        %675 = vmatmul.mubr.bf16.gmra.mxu0 %v637
        %v676 = vpop.f32.mrf.mxu0
        %v677 = vadd.f32 %v633, %v676
        %v678 = vpop.f32.mrf.mxu0
        %v679 = vpop.f32.mrf.mxu0
        %v680 = vpop.f32.mrf.mxu0
        %681 = vdwg.mxu0
        %v682 = vsel %vm635, %v677, -inf
        %683 = vmax.xlane.f32.xlu0 %v682
        %v684 = vpop.xlane.xlu0 %683
        %v685 = vsub.f32 %v677, %v684
        %v686 = vmul.f32 %v685, 1.442695
        %v687 = vpow.pop %v686
        %v688 = vsel %vm635, %v687, 0.0
        %689 = vadd.xlane.f32.xlu0 %v688
        %v690 = vpop.xlane.xlu0 %689
        %v691 = vrcp.pop %v690
        %v692 = vmul.f32 %v687, %v691
        %v693 = vpack.c.bf16 %v692, %v692
        %695 = vrot.lane.b32.xlu0 %v627, 96
        %v696 = vpop.permute.xlu0 %695
        %v698 = vsel %vm635, %v693, 0
        %vm700 = vcmask 1043456
        %v702 = vsel %vm700, %v696, 0
        %704 = vmatprep.subr.bf16.mxu0 0
        %705 = vmatpush1.bf16.msra.mxu0 0
        %706 = vmatprep.subr.bf16.mxu0 0
        %707 = vmatpush1.bf16.msra.mxu0 0
        %708 = vmatprep.subr.bf16.mxu0 0
        %709 = vmatpush1.bf16.msra.mxu0 0
        %710 = vmatprep.subr.bf16.mxu0 0
        %711 = vmatpush1.bf16.msra.mxu0 0
        %712 = vmatprep.subr.bf16.mxu0 0
        %713 = vmatpush1.bf16.msra.mxu0 0
        %714 = vmatprep.subr.bf16.mxu0 0
        %715 = vmatpush1.bf16.msra.mxu0 0
        %716 = vmatprep.subr.bf16.mxu0 0
        %717 = vmatpush1.bf16.msra.mxu0 0
        %718 = vmatprep.subr.bf16.mxu0 0
        %719 = vmatpush1.bf16.msra.mxu0 %v702
        %720 = vmatprep.subr.bf16.mxu0 0
        %721 = vmatpush2.bf16.msra.mxu0 0
        %722 = vmatprep.subr.bf16.mxu0 0
        %723 = vmatpush2.bf16.msra.mxu0 0
        %724 = vmatprep.subr.bf16.mxu0 0
        %725 = vmatpush2.bf16.msra.mxu0 0
        %726 = vmatprep.subr.bf16.mxu0 0
        %727 = vmatpush2.bf16.msra.mxu0 0
        %728 = vmatprep.subr.bf16.mxu0 0
        %729 = vmatpush2.bf16.msra.mxu0 0
        %730 = vmatprep.subr.bf16.mxu0 0
        %731 = vmatpush2.bf16.msra.mxu0 0
        %732 = vmatprep.subr.bf16.mxu0 0
        %733 = vmatpush2.bf16.msra.mxu0 0
        %734 = vmatprep.subr.bf16.mxu0 0
        %735 = vmatpush2.bf16.msra.mxu0 0
        %736 = vmatprep.mubr.bf16.mxu0 0
        %737 = vmatmul.mubr.bf16.gmra.mxu0 %v698
        %v738 = vpop.f32.mrf.mxu0
        %v739 = vadd.f32 0.0, %v738
        %v740 = vpop.f32.mrf.mxu0
        %v741 = vpop.f32.mrf.mxu0
        %v742 = vpop.f32.mrf.mxu0
        %743 = vdwg.mxu0
        %744 = vst.msk [vmem:[%s476] sm:$0xff] %vm635, %v677
        %746 = vrot.lane.b32.xlu0 %v626, 120
        %v747 = vpop.permute.xlu0 %746
        %748 = vrot.lane.b32.xlu0 %v627, 120
        %v749 = vpop.permute.xlu0 %748
        %v751 = vsel %vm635, %v747, 0
        %v754 = vsel %vm635, %v749, 0
        %756 = vmatprep.subr.bf16.mxu0 0
        %757 = vmatpush1.bf16.xpose.msra.mxu0 0
        %758 = vmatprep.subr.bf16.mxu0 0
        %759 = vmatpush1.bf16.xpose.msra.mxu0 0
        %760 = vmatprep.subr.bf16.mxu0 0
        %761 = vmatpush1.bf16.xpose.msra.mxu0 0
        %762 = vmatprep.subr.bf16.mxu0 0
        %763 = vmatpush1.bf16.xpose.msra.mxu0 0
        %764 = vmatprep.subr.bf16.mxu0 0
        %765 = vmatpush1.bf16.xpose.msra.mxu0 0
        %766 = vmatprep.subr.bf16.mxu0 0
        %767 = vmatpush1.bf16.xpose.msra.mxu0 0
        %768 = vmatprep.subr.bf16.mxu0 0
        %769 = vmatpush1.bf16.xpose.msra.mxu0 0
        %770 = vmatprep.subr.bf16.mxu0 0
        %771 = vmatpush1.bf16.xpose.msra.mxu0 %v754
        %772 = vmatprep.subr.bf16.mxu0 0
        %773 = vmatpush2.bf16.xpose.msra.mxu0 0
        %774 = vmatprep.subr.bf16.mxu0 0
        %775 = vmatpush2.bf16.xpose.msra.mxu0 0
        %776 = vmatprep.subr.bf16.mxu0 0
        %777 = vmatpush2.bf16.xpose.msra.mxu0 0
        %778 = vmatprep.subr.bf16.mxu0 0
        %779 = vmatpush2.bf16.xpose.msra.mxu0 0
        %780 = vmatprep.subr.bf16.mxu0 0
        %781 = vmatpush2.bf16.xpose.msra.mxu0 0
        %782 = vmatprep.subr.bf16.mxu0 0
        %783 = vmatpush2.bf16.xpose.msra.mxu0 0
        %784 = vmatprep.subr.bf16.mxu0 0
        %785 = vmatpush2.bf16.xpose.msra.mxu0 0
        %786 = vmatprep.subr.bf16.mxu0 0
        %787 = vmatpush2.bf16.xpose.msra.mxu0 0
        %788 = vmatprep.mubr.bf16.mxu0 0
        %789 = vmatmul.mubr.bf16.gmra.mxu0 %v751
        %v790 = vpop.f32.mrf.mxu0
        %v791 = vadd.f32 %v633, %v790
        %v792 = vpop.f32.mrf.mxu0
        %v793 = vpop.f32.mrf.mxu0
        %v794 = vpop.f32.mrf.mxu0
        %795 = vdwg.mxu0
        %v796 = vsel %vm635, %v791, -inf
        %797 = vmax.xlane.f32.xlu0 %v796
        %v798 = vpop.xlane.xlu0 %797
        %v799 = vsub.f32 %v791, %v798
        %v800 = vmul.f32 %v799, 1.442695
        %v801 = vpow.pop %v800
        %v802 = vsel %vm635, %v801, 0.0
        %803 = vadd.xlane.f32.xlu0 %v802
        %v804 = vpop.xlane.xlu0 %803
        %v805 = vrcp.pop %v804
        %v806 = vmul.f32 %v801, %v805
        %v807 = vpack.c.bf16 %v806, %v806
        %808 = vrot.lane.b32.xlu0 %v627, 88
        %v809 = vpop.permute.xlu0 %808
        %v811 = vsel %vm635, %v807, 0
        %v814 = vsel %vm700, %v809, 0
        %816 = vmatprep.subr.bf16.mxu0 0
        %817 = vmatpush1.bf16.msra.mxu0 0
        %818 = vmatprep.subr.bf16.mxu0 0
        %819 = vmatpush1.bf16.msra.mxu0 0
        %820 = vmatprep.subr.bf16.mxu0 0
        %821 = vmatpush1.bf16.msra.mxu0 0
        %822 = vmatprep.subr.bf16.mxu0 0
        %823 = vmatpush1.bf16.msra.mxu0 0
        %824 = vmatprep.subr.bf16.mxu0 0
        %825 = vmatpush1.bf16.msra.mxu0 0
        %826 = vmatprep.subr.bf16.mxu0 0
        %827 = vmatpush1.bf16.msra.mxu0 0
        %828 = vmatprep.subr.bf16.mxu0 0
        %829 = vmatpush1.bf16.msra.mxu0 0
        %830 = vmatprep.subr.bf16.mxu0 0
        %831 = vmatpush1.bf16.msra.mxu0 %v814
        %832 = vmatprep.subr.bf16.mxu0 0
        %833 = vmatpush2.bf16.msra.mxu0 0
        %834 = vmatprep.subr.bf16.mxu0 0
        %835 = vmatpush2.bf16.msra.mxu0 0
        %836 = vmatprep.subr.bf16.mxu0 0
        %837 = vmatpush2.bf16.msra.mxu0 0
        %838 = vmatprep.subr.bf16.mxu0 0
        %839 = vmatpush2.bf16.msra.mxu0 0
        %840 = vmatprep.subr.bf16.mxu0 0
        %841 = vmatpush2.bf16.msra.mxu0 0
        %842 = vmatprep.subr.bf16.mxu0 0
        %843 = vmatpush2.bf16.msra.mxu0 0
        %844 = vmatprep.subr.bf16.mxu0 0
        %845 = vmatpush2.bf16.msra.mxu0 0
        %846 = vmatprep.subr.bf16.mxu0 0
        %847 = vmatpush2.bf16.msra.mxu0 0
        %848 = vmatprep.mubr.bf16.mxu0 0
        %849 = vmatmul.mubr.bf16.gmra.mxu0 %v811
        %v850 = vpop.f32.mrf.mxu0
        %v851 = vadd.f32 0.0, %v850
        %v852 = vpop.f32.mrf.mxu0
        %v853 = vpop.f32.mrf.mxu0
        %v854 = vpop.f32.mrf.mxu0
        %855 = vdwg.mxu0
        %s856 = scalar_lea.vmem %s476, 8 [#allocation11]
        %857 = vst.msk [vmem:[%s856] sm:$0xff] %vm635, %v791
        %858 = vrot.lane.b32.xlu0 %v626, 112
        %v859 = vpop.permute.xlu0 %858
        %860 = vrot.lane.b32.xlu0 %v627, 112
        %v861 = vpop.permute.xlu0 %860
        %v863 = vsel %vm635, %v859, 0
        %v866 = vsel %vm635, %v861, 0
        %868 = vmatprep.subr.bf16.mxu0 0
        %869 = vmatpush1.bf16.xpose.msra.mxu0 0
        %870 = vmatprep.subr.bf16.mxu0 0
        %871 = vmatpush1.bf16.xpose.msra.mxu0 0
        %872 = vmatprep.subr.bf16.mxu0 0
        %873 = vmatpush1.bf16.xpose.msra.mxu0 0
        %874 = vmatprep.subr.bf16.mxu0 0
        %875 = vmatpush1.bf16.xpose.msra.mxu0 0
        %876 = vmatprep.subr.bf16.mxu0 0
        %877 = vmatpush1.bf16.xpose.msra.mxu0 0
        %878 = vmatprep.subr.bf16.mxu0 0
        %879 = vmatpush1.bf16.xpose.msra.mxu0 0
        %880 = vmatprep.subr.bf16.mxu0 0
        %881 = vmatpush1.bf16.xpose.msra.mxu0 0
        %882 = vmatprep.subr.bf16.mxu0 0
        %883 = vmatpush1.bf16.xpose.msra.mxu0 %v866
        %884 = vmatprep.subr.bf16.mxu0 0
        %885 = vmatpush2.bf16.xpose.msra.mxu0 0
        %886 = vmatprep.subr.bf16.mxu0 0
        %887 = vmatpush2.bf16.xpose.msra.mxu0 0
        %888 = vmatprep.subr.bf16.mxu0 0
        %889 = vmatpush2.bf16.xpose.msra.mxu0 0
        %890 = vmatprep.subr.bf16.mxu0 0
        %891 = vmatpush2.bf16.xpose.msra.mxu0 0
        %892 = vmatprep.subr.bf16.mxu0 0
        %893 = vmatpush2.bf16.xpose.msra.mxu0 0
        %894 = vmatprep.subr.bf16.mxu0 0
        %895 = vmatpush2.bf16.xpose.msra.mxu0 0
        %896 = vmatprep.subr.bf16.mxu0 0
        %897 = vmatpush2.bf16.xpose.msra.mxu0 0
        %898 = vmatprep.subr.bf16.mxu0 0
        %899 = vmatpush2.bf16.xpose.msra.mxu0 0
        %900 = vmatprep.mubr.bf16.mxu0 0
        %901 = vmatmul.mubr.bf16.gmra.mxu0 %v863
        %v902 = vpop.f32.mrf.mxu0
        %v903 = vadd.f32 %v633, %v902
        %v904 = vpop.f32.mrf.mxu0
        %v905 = vpop.f32.mrf.mxu0
        %v906 = vpop.f32.mrf.mxu0
        %907 = vdwg.mxu0
        %v908 = vsel %vm635, %v903, -inf
        %909 = vmax.xlane.f32.xlu0 %v908
        %v910 = vpop.xlane.xlu0 %909
        %v911 = vsub.f32 %v903, %v910
        %v912 = vmul.f32 %v911, 1.442695
        %v913 = vpow.pop %v912
        %v914 = vsel %vm635, %v913, 0.0
        %915 = vadd.xlane.f32.xlu0 %v914
        %v916 = vpop.xlane.xlu0 %915
        %v917 = vrcp.pop %v916
        %v918 = vmul.f32 %v913, %v917
        %v919 = vpack.c.bf16 %v918, %v918
        %920 = vrot.lane.b32.xlu0 %v627, 80
        %v921 = vpop.permute.xlu0 %920
        %v923 = vsel %vm635, %v919, 0
        %v926 = vsel %vm700, %v921, 0
        %928 = vmatprep.subr.bf16.mxu0 0
        %929 = vmatpush1.bf16.msra.mxu0 0
        %930 = vmatprep.subr.bf16.mxu0 0
        %931 = vmatpush1.bf16.msra.mxu0 0
        %932 = vmatprep.subr.bf16.mxu0 0
        %933 = vmatpush1.bf16.msra.mxu0 0
        %934 = vmatprep.subr.bf16.mxu0 0
        %935 = vmatpush1.bf16.msra.mxu0 0
        %936 = vmatprep.subr.bf16.mxu0 0
        %937 = vmatpush1.bf16.msra.mxu0 0
        %938 = vmatprep.subr.bf16.mxu0 0
        %939 = vmatpush1.bf16.msra.mxu0 0
        %940 = vmatprep.subr.bf16.mxu0 0
        %941 = vmatpush1.bf16.msra.mxu0 0
        %942 = vmatprep.subr.bf16.mxu0 0
        %943 = vmatpush1.bf16.msra.mxu0 %v926
        %944 = vmatprep.subr.bf16.mxu0 0
        %945 = vmatpush2.bf16.msra.mxu0 0
        %946 = vmatprep.subr.bf16.mxu0 0
        %947 = vmatpush2.bf16.msra.mxu0 0
        %948 = vmatprep.subr.bf16.mxu0 0
        %949 = vmatpush2.bf16.msra.mxu0 0
        %950 = vmatprep.subr.bf16.mxu0 0
        %951 = vmatpush2.bf16.msra.mxu0 0
        %952 = vmatprep.subr.bf16.mxu0 0
        %953 = vmatpush2.bf16.msra.mxu0 0
        %954 = vmatprep.subr.bf16.mxu0 0
        %955 = vmatpush2.bf16.msra.mxu0 0
        %956 = vmatprep.subr.bf16.mxu0 0
        %957 = vmatpush2.bf16.msra.mxu0 0
        %958 = vmatprep.subr.bf16.mxu0 0
        %959 = vmatpush2.bf16.msra.mxu0 0
        %960 = vmatprep.mubr.bf16.mxu0 0
        %961 = vmatmul.mubr.bf16.gmra.mxu0 %v923
        %v962 = vpop.f32.mrf.mxu0
        %v963 = vadd.f32 0.0, %v962
        %v964 = vpop.f32.mrf.mxu0
        %v965 = vpop.f32.mrf.mxu0
        %v966 = vpop.f32.mrf.mxu0
        %967 = vdwg.mxu0
        %s968 = scalar_lea.vmem %s476, 16 [#allocation11]
        %969 = vst.msk [vmem:[%s968] sm:$0xff] %vm635, %v903
        %970 = vrot.lane.b32.xlu0 %v626, 104
        %v971 = vpop.permute.xlu0 %970
        %972 = vrot.lane.b32.xlu0 %v627, 104
        %v973 = vpop.permute.xlu0 %972
        %v975 = vsel %vm635, %v971, 0
        %v978 = vsel %vm635, %v973, 0
        %980 = vmatprep.subr.bf16.mxu0 0
        %981 = vmatpush1.bf16.xpose.msra.mxu0 0
        %982 = vmatprep.subr.bf16.mxu0 0
        %983 = vmatpush1.bf16.xpose.msra.mxu0 0
        %984 = vmatprep.subr.bf16.mxu0 0
        %985 = vmatpush1.bf16.xpose.msra.mxu0 0
        %986 = vmatprep.subr.bf16.mxu0 0
        %987 = vmatpush1.bf16.xpose.msra.mxu0 0
        %988 = vmatprep.subr.bf16.mxu0 0
        %989 = vmatpush1.bf16.xpose.msra.mxu0 0
        %990 = vmatprep.subr.bf16.mxu0 0
        %991 = vmatpush1.bf16.xpose.msra.mxu0 0
        %992 = vmatprep.subr.bf16.mxu0 0
        %993 = vmatpush1.bf16.xpose.msra.mxu0 0
        %994 = vmatprep.subr.bf16.mxu0 0
        %995 = vmatpush1.bf16.xpose.msra.mxu0 %v978
        %996 = vmatprep.subr.bf16.mxu0 0
        %997 = vmatpush2.bf16.xpose.msra.mxu0 0
        %998 = vmatprep.subr.bf16.mxu0 0
        %999 = vmatpush2.bf16.xpose.msra.mxu0 0
        %1000 = vmatprep.subr.bf16.mxu0 0
        %1001 = vmatpush2.bf16.xpose.msra.mxu0 0
        %1002 = vmatprep.subr.bf16.mxu0 0
        %1003 = vmatpush2.bf16.xpose.msra.mxu0 0
        %1004 = vmatprep.subr.bf16.mxu0 0
        %1005 = vmatpush2.bf16.xpose.msra.mxu0 0
        %1006 = vmatprep.subr.bf16.mxu0 0
        %1007 = vmatpush2.bf16.xpose.msra.mxu0 0
        %1008 = vmatprep.subr.bf16.mxu0 0
        %1009 = vmatpush2.bf16.xpose.msra.mxu0 0
        %1010 = vmatprep.subr.bf16.mxu0 0
        %1011 = vmatpush2.bf16.xpose.msra.mxu0 0
        %1012 = vmatprep.mubr.bf16.mxu0 0
        %1013 = vmatmul.mubr.bf16.gmra.mxu0 %v975
        %v1014 = vpop.f32.mrf.mxu0
        %v1015 = vadd.f32 %v633, %v1014
        %v1016 = vpop.f32.mrf.mxu0
        %v1017 = vpop.f32.mrf.mxu0
        %v1018 = vpop.f32.mrf.mxu0
        %1019 = vdwg.mxu0
        %v1020 = vsel %vm635, %v1015, -inf
        %1021 = vmax.xlane.f32.xlu0 %v1020
        %v1022 = vpop.xlane.xlu0 %1021
        %v1023 = vsub.f32 %v1015, %v1022
        %v1024 = vmul.f32 %v1023, 1.442695
        %v1025 = vpow.pop %v1024
        %v1026 = vsel %vm635, %v1025, 0.0
        %1027 = vadd.xlane.f32.xlu0 %v1026
        %v1028 = vpop.xlane.xlu0 %1027
        %v1029 = vrcp.pop %v1028
        %v1030 = vmul.f32 %v1025, %v1029
        %v1031 = vpack.c.bf16 %v1030, %v1030
        %1032 = vrot.lane.b32.xlu0 %v627, 72
        %v1033 = vpop.permute.xlu0 %1032
        %v1035 = vsel %vm635, %v1031, 0
        %v1038 = vsel %vm700, %v1033, 0
        %1040 = vmatprep.subr.bf16.mxu0 0
        %1041 = vmatpush1.bf16.msra.mxu0 0
        %1042 = vmatprep.subr.bf16.mxu0 0
        %1043 = vmatpush1.bf16.msra.mxu0 0
        %1044 = vmatprep.subr.bf16.mxu0 0
        %1045 = vmatpush1.bf16.msra.mxu0 0
        %1046 = vmatprep.subr.bf16.mxu0 0
        %1047 = vmatpush1.bf16.msra.mxu0 0
        %1048 = vmatprep.subr.bf16.mxu0 0
        %1049 = vmatpush1.bf16.msra.mxu0 0
        %1050 = vmatprep.subr.bf16.mxu0 0
        %1051 = vmatpush1.bf16.msra.mxu0 0
        %1052 = vmatprep.subr.bf16.mxu0 0
        %1053 = vmatpush1.bf16.msra.mxu0 0
        %1054 = vmatprep.subr.bf16.mxu0 0
        %1055 = vmatpush1.bf16.msra.mxu0 %v1038
        %1056 = vmatprep.subr.bf16.mxu0 0
        %1057 = vmatpush2.bf16.msra.mxu0 0
        %1058 = vmatprep.subr.bf16.mxu0 0
        %1059 = vmatpush2.bf16.msra.mxu0 0
        %1060 = vmatprep.subr.bf16.mxu0 0
        %1061 = vmatpush2.bf16.msra.mxu0 0
        %1062 = vmatprep.subr.bf16.mxu0 0
        %1063 = vmatpush2.bf16.msra.mxu0 0
        %1064 = vmatprep.subr.bf16.mxu0 0
        %1065 = vmatpush2.bf16.msra.mxu0 0
        %1066 = vmatprep.subr.bf16.mxu0 0
        %1067 = vmatpush2.bf16.msra.mxu0 0
        %1068 = vmatprep.subr.bf16.mxu0 0
        %1069 = vmatpush2.bf16.msra.mxu0 0
        %1070 = vmatprep.subr.bf16.mxu0 0
        %1071 = vmatpush2.bf16.msra.mxu0 0
        %1072 = vmatprep.mubr.bf16.mxu0 0
        %1073 = vmatmul.mubr.bf16.gmra.mxu0 %v1035
        %v1074 = vpop.f32.mrf.mxu0
        %v1075 = vadd.f32 0.0, %v1074
        %v1076 = vpop.f32.mrf.mxu0
        %v1077 = vpop.f32.mrf.mxu0
        %v1078 = vpop.f32.mrf.mxu0
        %1079 = vdwg.mxu0
        %s1080 = scalar_lea.vmem %s476, 24 [#allocation11]
        %1081 = vst.msk [vmem:[%s1080] sm:$0xff] %vm635, %v1015
        %1083 = vrot.lane.b32.xlu0 %v851, 8
        %v1084 = vpop.permute.xlu0 %1083
        %1087 = vrot.lane.b32.xlu0 %v963, 16
        %v1088 = vpop.permute.xlu0 %1087
        %1091 = vrot.lane.b32.xlu0 %v1075, 24
        %v1092 = vpop.permute.xlu0 %1091
        %v1094 = vsel %vm635, %v739, %v1084
        %vm1095 = vcmask 130048
        %v1096 = vsel %vm1095, %v1094, %v1088
        %vm1097 = vcmask 195584
        %v1098 = vsel %vm1097, %v1096, %v1092
        %1099 = vst.msk [vmem:[%s469] sm:$0xff] %vm515, %v1098
        %s1100 = sand.u32 %s248, 1
        %s1101 = scalar_lea.sflag [#allocation4], %s1100
        %s1102 = sand.u32 %s248, 1
        %s1103 = smul.addr %s1102, 8
        %s1104 = scalar_lea.vmem [#allocation10], %s1103
        %s1105 = sand.u32 %s278, 1
        %s1106 = scalar_lea.sflag [#allocation12], %s1105
        %s1107 = sand.u32 %s278, 1
        %s1108 = smul.addr %s1107, 32
        %s1109 = scalar_lea.vmem [#allocation11], %s1108
        // Predicated region
        $region65: #{tpu_custom_call.1} parent=47 // pred_check
          %p1110 = pneg %p258
        $region66: #{tpu_custom_call.1} parent=47 // pred_check_branch
          %1112 = sbr.rel (%p1110) target = $region68
        $region67: #{tpu_custom_call.1} parent=47 // pred_region
          %s1114 = ssub.s32 128, 128
          %1115 = vsyncadd %s1101, %s1114
          %s1116 = sadd.s32 %s38, %s40
          %s1117 = sadd.s32 %s1116, %s39
          %s1118 = smul.addr %s1117, 128
          %s1119 = scalar_lea.hbm %s7, %s1118
          %s1121 = sshll.u32 %s1104, 4
          %s1122 = int_to_ptr.vmem [resolvable:$true] %s1121
          %1124 = dma.vmem_to_hbm [thread:$0]  %s1122, 128, %s1119, %s1101
        $region68: #{tpu_custom_call.1} parent=47 // pred_fallthru
          _
        // Predicated region
        $region69: #{tpu_custom_call.1} parent=47 // pred_check
          %p1125 = pneg %p288
        $region70: #{tpu_custom_call.1} parent=47 // pred_check_branch
          %1127 = sbr.rel (%p1125) target = $region72
        $region71: #{tpu_custom_call.1} parent=47 // pred_region
          %s1128 = smul.u32 4, %s38
          %s1130 = ssub.s32 512, 512
          %1131 = vsyncadd %s1106, %s1130
          %s1132 = sadd.s32 %s40, %s1128
          %s1133 = smul.addr %s39, 4
          %s1134 = sadd.s32 %s1132, %s1133
          %s1135 = smul.addr %s1134, 128
          %s1136 = scalar_lea.hbm %s8, %s1135
          %s1137 = sshll.u32 %s1109, 4
          %s1138 = int_to_ptr.vmem [resolvable:$true] %s1137
          %1143 = dma.vmem_to_hbm [thread:$0]  %s1138, 512, %s1136, %s1106, 128, 128, 8
        $region72: #{tpu_custom_call.1} parent=47 // pred_fallthru
          _
      $region48: #{tpu_custom_call.1} parent=5 // pred_fallthru
        _
      %p1144 = scmp.le.s32.totalorder 2, %s28
      // Predicated region
      $region73: #{tpu_custom_call.1} parent=5 // pred_check
        %p1145 = pneg %p1144
      $region74: #{tpu_custom_call.1} parent=5 // pred_check_branch
        %1147 = sbr.rel (%p1145) target = $region76
      $region75: #{tpu_custom_call.1} parent=5 // pred_region
        %s1148 = ssub.s32 %s28, 2
        // Predicated region
        $region77: #{tpu_custom_call.1} parent=75 // pred_check
          %p1149 = pneg %p264
        $region78: #{tpu_custom_call.1} parent=75 // pred_check_branch
          %1151 = sbr.rel (%p1149) target = $region80
        $region79: #{tpu_custom_call.1} parent=75 // pred_region
          %s1152 = sand.u32 %s249, 1
          %s1153 = scalar_lea.sflag [#allocation4], %s1152
          %s1154 = sand.u32 %s249, 1
          %s1155 = smul.addr %s1154, 8
          %s1156 = scalar_lea.vmem [#allocation10], %s1155
          %1157 = dma.done %s1153, 128
        $region80: #{tpu_custom_call.1} parent=75 // pred_fallthru
          _
        // Predicated region
        $region81: #{tpu_custom_call.1} parent=75 // pred_check
          %p1158 = pneg %p294
        $region82: #{tpu_custom_call.1} parent=75 // pred_check_branch
          %1160 = sbr.rel (%p1158) target = $region84
        $region83: #{tpu_custom_call.1} parent=75 // pred_region
          %s1161 = sand.u32 %s279, 1
          %s1162 = scalar_lea.sflag [#allocation12], %s1161
          %s1163 = sand.u32 %s279, 1
          %s1164 = smul.addr %s1163, 32
          %s1165 = scalar_lea.vmem [#allocation11], %s1164
          %1166 = dma.done %s1162, 512
        $region84: #{tpu_custom_call.1} parent=75 // pred_fallthru
          _
      $region76: #{tpu_custom_call.1} parent=5 // pred_fallthru
        _
    $region6: #{tpu_custom_call.1} parent=1 // loop_footer
      %s32 = sadd.s32 1, %s28
    $region7: #{tpu_custom_call.1} parent=1 // loop_footer_branch
      %27 = sbr.rel target = $region3
    $region8: #{tpu_custom_call.1} parent=1 // loop_exit
      _
    %1167 = vsyncpa [#allocation3], 1
    %s1168 = scalar_lea.sflag [#allocation3], 1
    %1169 = vsyncpa %s1168, 1
    %1170 = vsyncpa [#allocation6], 1
    %s1171 = scalar_lea.sflag [#allocation6], 1
    %1172 = vsyncpa %s1171, 1
    %1173 = vsyncpa [#allocation9], 1
    %1174 = vsyncpa [#allocation4], 1
    %s1175 = scalar_lea.sflag [#allocation4], 1
    %1176 = vsyncpa %s1175, 1
    %1177 = vsyncpa [#allocation12], 1
    %s1178 = scalar_lea.sflag [#allocation12], 1
    %1179 = vsyncpa %s1178, 1

</llo_original>
